<compile_context>
chip_gen: v7x
topology: tpu7x:2x2x1
jax: 0.10.0
libtpu: 0.0.40
codegen_flags: <defaults>
</compile_context>

<pallas_src>
import random

import jax
import jax.numpy as jnp
from jax.experimental import pallas as pl
from jax.experimental.pallas import tpu as pltpu

# ---- problem sizes (small, consistent with the module's forward) -----------
BATCH = 2
SEQ_IN = 8
SEQ_OUT = 8
FEAT = 4
HIDDEN = 32
# TODO(synk): n_layers fixed to 1 (module only asserts encoder/decoder layer
# counts match; multi-layer would repeat the same fused cell per layer).


def _full_spec(shape):
    """Whole-array VMEM block, no grid."""
    return pl.BlockSpec(shape, lambda: (0,) * len(shape))


# ---------------------------- fused kernel -----------------------------------
def make_seq2seq_kernel(batch, seq_in, seq_out, feat, hidden):
    B, F, H = batch, feat, hidden

    def kernel(tf_ref,          # SMEM (seq_out,) int32 teacher-forcing flags
               xs_ref,          # VMEM (seq_in*B, F)   time-major inputs
               ys_ref,          # VMEM (seq_out*B, F)  time-major targets
               enc_wih_ref,     # VMEM (F, 4H)
               enc_whh_ref,     # VMEM (H, 4H)
               enc_b_ref,       # VMEM (1, 4H)   (b_ih + b_hh pre-summed)
               dec_w_ref,       # VMEM (F+H, 4H) stacked [W_ih; W_hh]
               dec_b_ref,       # VMEM (1, 4H)
               fc_w_ref,        # VMEM (H, F)
               fc_b_ref,        # VMEM (1, F)
               out_ref):        # VMEM (B, seq_out*F)
        # ---- loop-invariant loads / broadcasts (hoisted once) --------------
        enc_whh = enc_whh_ref[...]
        dec_w = dec_w_ref[...]
        fc_w = fc_w_ref[...]
        enc_b = jnp.broadcast_to(enc_b_ref[...], (B, 4 * H))
        dec_b = jnp.broadcast_to(dec_b_ref[...], (B, 4 * H))
        fc_b = jnp.broadcast_to(fc_b_ref[...], (B, F))

        xs = xs_ref[...]                     # (seq_in*B, F)
        ys = ys_ref[...]                     # (seq_out*B, F)

        # ---- encoder: input projection hoisted out of the recurrence -------
        x_gates = jnp.dot(xs, enc_wih_ref[...],
                          preferred_element_type=jnp.float32)   # (seq_in*B, 4H)

        def lstm_cell(gates, c):
            # PyTorch gate order: i, f, g, o.  4H == 128 -> gates is one vreg
            # wide; do the EUP activations on the full vreg, then slice.
            sig = jax.nn.sigmoid(gates)
            th = jnp.tanh(gates)
            i_g = sig[:, 0:H]
            f_g = sig[:, H:2 * H]
            g_g = th[:, 2 * H:3 * H]
            o_g = sig[:, 3 * H:4 * H]
            c_new = f_g * c + i_g * g_g
            h_new = o_g * jnp.tanh(c_new)
            return h_new, c_new

        h = jnp.zeros((B, H), jnp.float32)
        c = jnp.zeros((B, H), jnp.float32)
        for t in range(seq_in):              # unrolled serial recurrence
            gates = (x_gates[t * B:(t + 1) * B, :]
                     + jnp.dot(h, enc_whh, preferred_element_type=jnp.float32)
                     + enc_b)
            h, c = lstm_cell(gates, c)

        # ---- decoder: single fused matmul per step, in-kernel TF select ----
        dec_in = xs[(seq_in - 1) * B: seq_in * B, :]             # last input step
        outs = []
        for i in range(seq_out):             # unrolled
            xh = jnp.concatenate([dec_in, h], axis=-1)           # (B, F+H)
            gates = jnp.dot(xh, dec_w, preferred_element_type=jnp.float32) + dec_b
            h, c = lstm_cell(gates, c)
            out = jnp.dot(h, fc_w, preferred_element_type=jnp.float32) + fc_b
            outs.append(out)
            # teacher forcing: arithmetic blend driven by an SMEM scalar flag
            m = (tf_ref[i] != 0).astype(jnp.float32)
            y_i = ys[i * B:(i + 1) * B, :]
            dec_in = m * y_i + (1.0 - m) * out

        # one dense store of all decoder outputs: (B, seq_out*F)
        out_ref[...] = jnp.concatenate(outs, axis=-1)

    return kernel


# ---------------------------- wrapper -----------------------------------------
def seq2seq_forward(x, y, params, teacher_forcing_ratio=0.5, seed=0):
    """Mirrors Seq2Seq.forward. x, y: [batch, seq, feat] -> [batch, tgt_seq, feat]."""
    B, S_in, F = x.shape
    _, S_out, _ = y.shape
    H = params["enc_whh"].shape[0]

    # time-major, flattened to 2-D so the kernel works on [rows, lanes] tiles
    xs = jnp.transpose(x, (1, 0, 2)).reshape(S_in * B, F)
    ys = jnp.transpose(y, (1, 0, 2)).reshape(S_out * B, F)

    # Deterministically seeded host-side teacher-forcing decisions, delivered
    # to the kernel as an SMEM int32 mask (runtime data, not baked control flow).
    rng = random.Random(seed)
    tf_mask = jnp.array(
        [1 if rng.random() < teacher_forcing_ratio else 0 for _ in range(S_out)],
        dtype=jnp.int32)

    # Stack decoder input/recurrent weights once so each step is a single matmul.
    dec_w = jnp.concatenate([params["dec_wih"], params["dec_whh"]], axis=0)  # (F+H, 4H)

    kernel = make_seq2seq_kernel(B, S_in, S_out, F, H)
    out_flat = pl.pallas_call(
        kernel,
        out_shape=jax.ShapeDtypeStruct((B, S_out * F), jnp.float32),
        in_specs=[
            pl.BlockSpec(memory_space=pltpu.MemorySpace.SMEM),   # tf_mask
            _full_spec(xs.shape),
            _full_spec(ys.shape),
            _full_spec(params["enc_wih"].shape),
            _full_spec(params["enc_whh"].shape),
            _full_spec(params["enc_b"].shape),
            _full_spec(dec_w.shape),
            _full_spec(params["dec_b"].shape),
            _full_spec(params["fc_w"].shape),
            _full_spec(params["fc_b"].shape),
        ],
        out_specs=_full_spec((B, S_out * F)),
    )(tf_mask, xs, ys,
      params["enc_wih"], params["enc_whh"], params["enc_b"],
      dec_w, params["dec_b"], params["fc_w"], params["fc_b"])

    # (B, S_out*F) -> (B, S_out, F); pure view reshape, matches torch layout.
    return out_flat.reshape(B, S_out, F)


# ---------------------------- parameter init ---------------------------------
def init_params(key):
    ks = jax.random.split(key, 10)
    s = 0.1
    # Weights stored pre-transposed ([in, 4H] etc.) for row-major matmuls.
    # TODO(synk): biases here stand for PyTorch's (b_ih + b_hh) pre-summed; an
    # exporter from a torch checkpoint must sum the two LSTM biases.
    return {
        "enc_wih": s * jax.random.normal(ks[0], (FEAT, 4 * HIDDEN), jnp.float32),
        "enc_whh": s * jax.random.normal(ks[1], (HIDDEN, 4 * HIDDEN), jnp.float32),
        "enc_b":   s * jax.random.normal(ks[2], (1, 4 * HIDDEN), jnp.float32),
        "dec_wih": s * jax.random.normal(ks[3], (FEAT, 4 * HIDDEN), jnp.float32),
        "dec_whh": s * jax.random.normal(ks[4], (HIDDEN, 4 * HIDDEN), jnp.float32),
        "dec_b":   s * jax.random.normal(ks[5], (1, 4 * HIDDEN), jnp.float32),
        "fc_w":    s * jax.random.normal(ks[6], (HIDDEN, FEAT), jnp.float32),
        "fc_b":    s * jax.random.normal(ks[7], (1, FEAT), jnp.float32),
    }


if __name__ == "__main__":
    key = jax.random.PRNGKey(0)
    k_p, k_x, k_y = jax.random.split(key, 3)
    params = init_params(k_p)
    x = jax.random.normal(k_x, (BATCH, SEQ_IN, FEAT), jnp.float32)
    y = jax.random.normal(k_y, (BATCH, SEQ_OUT, FEAT), jnp.float32)

    out = seq2seq_forward(x, y, params, teacher_forcing_ratio=0.5, seed=0)
    out = jax.block_until_ready(out)
    assert out.shape == (BATCH, SEQ_OUT, FEAT), out.shape
    assert bool(jnp.all(jnp.isfinite(out)))
    print("KERNEL_OK")
</pallas_src>

<mosaic_0001>
module attributes {stable_mosaic.version = 11 : i64} {
  func.func @kernel(%arg0: memref<8xi32, #tpu.memory_space<smem>>, %arg1: memref<16x4xf32, #tpu.memory_space<vmem>>, %arg2: memref<16x4xf32, #tpu.memory_space<vmem>>, %arg3: memref<4x128xf32, #tpu.memory_space<vmem>>, %arg4: memref<32x128xf32, #tpu.memory_space<vmem>>, %arg5: memref<1x128xf32, #tpu.memory_space<vmem>>, %arg6: memref<36x128xf32, #tpu.memory_space<vmem>>, %arg7: memref<1x128xf32, #tpu.memory_space<vmem>>, %arg8: memref<32x4xf32, #tpu.memory_space<vmem>>, %arg9: memref<1x4xf32, #tpu.memory_space<vmem>>, %arg10: memref<2x32xf32, #tpu.memory_space<vmem>>) attributes {dimension_semantics = [], scalar_prefetch = 0 : i64, scratch_operands = 0 : i64, tpu.core_type = #tpu.core_type<tc>} {
    %c0 = arith.constant 0 : index
    %c0_0 = arith.constant 0 : index
    %0 = vector.load %arg4[%c0, %c0_0] : memref<32x128xf32, #tpu.memory_space<vmem>>, vector<32x128xf32>
    %c0_1 = arith.constant 0 : index
    %c0_2 = arith.constant 0 : index
    %1 = vector.load %arg6[%c0_1, %c0_2] : memref<36x128xf32, #tpu.memory_space<vmem>>, vector<36x128xf32>
    %c0_3 = arith.constant 0 : index
    %c0_4 = arith.constant 0 : index
    %2 = vector.load %arg8[%c0_3, %c0_4] : memref<32x4xf32, #tpu.memory_space<vmem>>, vector<32x4xf32>
    %c0_5 = arith.constant 0 : index
    %c0_6 = arith.constant 0 : index
    %3 = vector.load %arg5[%c0_5, %c0_6] : memref<1x128xf32, #tpu.memory_space<vmem>>, vector<1x128xf32>
    %4 = vector.shape_cast %3 : vector<1x128xf32> to vector<1x128xf32>
    %5 = vector.broadcast %4 : vector<1x128xf32> to vector<2x128xf32>
    %c0_7 = arith.constant 0 : index
    %c0_8 = arith.constant 0 : index
    %6 = vector.load %arg7[%c0_7, %c0_8] : memref<1x128xf32, #tpu.memory_space<vmem>>, vector<1x128xf32>
    %7 = vector.shape_cast %6 : vector<1x128xf32> to vector<1x128xf32>
    %8 = vector.broadcast %7 : vector<1x128xf32> to vector<2x128xf32>
    %c0_9 = arith.constant 0 : index
    %c0_10 = arith.constant 0 : index
    %9 = vector.load %arg9[%c0_9, %c0_10] : memref<1x4xf32, #tpu.memory_space<vmem>>, vector<1x4xf32>
    %10 = vector.shape_cast %9 : vector<1x4xf32> to vector<1x4xf32>
    %11 = vector.broadcast %10 : vector<1x4xf32> to vector<2x4xf32>
    %c0_11 = arith.constant 0 : index
    %c0_12 = arith.constant 0 : index
    %12 = vector.load %arg1[%c0_11, %c0_12] : memref<16x4xf32, #tpu.memory_space<vmem>>, vector<16x4xf32>
    %c0_13 = arith.constant 0 : index
    %c0_14 = arith.constant 0 : index
    %13 = vector.load %arg2[%c0_13, %c0_14] : memref<16x4xf32, #tpu.memory_space<vmem>>, vector<16x4xf32>
    %c0_15 = arith.constant 0 : index
    %c0_16 = arith.constant 0 : index
    %14 = vector.load %arg3[%c0_15, %c0_16] : memref<4x128xf32, #tpu.memory_space<vmem>>, vector<4x128xf32>
    %cst = arith.constant dense<0.000000e+00> : vector<16x128xf32>
    %15 = tpu.matmul %12, %14, %cst {dimension_numbers = #tpu.dot_dimension_numbers<[1], [0], [0], [1], [0, 0, 1, 1], [], []>} : vector<16x4xf32>, vector<4x128xf32>, vector<16x128xf32> -> vector<16x128xf32>
    %cst_17 = arith.constant 0.000000e+00 : f32
    %16 = vector.broadcast %cst_17 : f32 to vector<2x32xf32>
    %cst_18 = arith.constant 0.000000e+00 : f32
    %17 = vector.broadcast %cst_18 : f32 to vector<2x32xf32>
    %18 = vector.extract_strided_slice %15 {offsets = [0, 0], sizes = [2, 128], strides = [1, 1]} : vector<16x128xf32> to vector<2x128xf32>
    %cst_19 = arith.constant dense<0.000000e+00> : vector<2x128xf32>
    %19 = tpu.matmul %16, %0, %cst_19 {dimension_numbers = #tpu.dot_dimension_numbers<[1], [0], [0], [1], [0, 0, 1, 1], [], []>} : vector<2x32xf32>, vector<32x128xf32>, vector<2x128xf32> -> vector<2x128xf32>
    %20 = arith.addf %18, %19 : vector<2x128xf32>
    %21 = arith.addf %20, %5 : vector<2x128xf32>
    %22 = arith.negf %21 : vector<2x128xf32>
    %23 = math.exp %22 : vector<2x128xf32>
    %cst_20 = arith.constant 1.000000e+00 : f32
    %24 = vector.broadcast %cst_20 : f32 to vector<2x128xf32>
    %25 = arith.addf %24, %23 : vector<2x128xf32>
    %26 = arith.divf %24, %25 : vector<2x128xf32>
    %27 = math.tanh %21 : vector<2x128xf32>
    %28 = vector.extract_strided_slice %26 {offsets = [0, 0], sizes = [2, 32], strides = [1, 1]} : vector<2x128xf32> to vector<2x32xf32>
    %29 = vector.extract_strided_slice %26 {offsets = [0, 32], sizes = [2, 32], strides = [1, 1]} : vector<2x128xf32> to vector<2x32xf32>
    %30 = vector.extract_strided_slice %27 {offsets = [0, 64], sizes = [2, 32], strides = [1, 1]} : vector<2x128xf32> to vector<2x32xf32>
    %31 = vector.extract_strided_slice %26 {offsets = [0, 96], sizes = [2, 32], strides = [1, 1]} : vector<2x128xf32> to vector<2x32xf32>
    %32 = arith.mulf %29, %17 : vector<2x32xf32>
    %33 = arith.mulf %28, %30 : vector<2x32xf32>
    %34 = arith.addf %32, %33 : vector<2x32xf32>
    %35 = math.tanh %34 : vector<2x32xf32>
    %36 = arith.mulf %31, %35 : vector<2x32xf32>
    %37 = vector.extract_strided_slice %15 {offsets = [2, 0], sizes = [2, 128], strides = [1, 1]} : vector<16x128xf32> to vector<2x128xf32>
    %cst_21 = arith.constant dense<0.000000e+00> : vector<2x128xf32>
    %38 = tpu.matmul %36, %0, %cst_21 {dimension_numbers = #tpu.dot_dimension_numbers<[1], [0], [0], [1], [0, 0, 1, 1], [], []>} : vector<2x32xf32>, vector<32x128xf32>, vector<2x128xf32> -> vector<2x128xf32>
    %39 = arith.addf %37, %38 : vector<2x128xf32>
    %40 = arith.addf %39, %5 : vector<2x128xf32>
    %41 = arith.negf %40 : vector<2x128xf32>
    %42 = math.exp %41 : vector<2x128xf32>
    %cst_22 = arith.constant 1.000000e+00 : f32
    %43 = vector.broadcast %cst_22 : f32 to vector<2x128xf32>
    %44 = arith.addf %43, %42 : vector<2x128xf32>
    %45 = arith.divf %43, %44 : vector<2x128xf32>
    %46 = math.tanh %40 : vector<2x128xf32>
    %47 = vector.extract_strided_slice %45 {offsets = [0, 0], sizes = [2, 32], strides = [1, 1]} : vector<2x128xf32> to vector<2x32xf32>
    %48 = vector.extract_strided_slice %45 {offsets = [0, 32], sizes = [2, 32], strides = [1, 1]} : vector<2x128xf32> to vector<2x32xf32>
    %49 = vector.extract_strided_slice %46 {offsets = [0, 64], sizes = [2, 32], strides = [1, 1]} : vector<2x128xf32> to vector<2x32xf32>
    %50 = vector.extract_strided_slice %45 {offsets = [0, 96], sizes = [2, 32], strides = [1, 1]} : vector<2x128xf32> to vector<2x32xf32>
    %51 = arith.mulf %48, %34 : vector<2x32xf32>
    %52 = arith.mulf %47, %49 : vector<2x32xf32>
    %53 = arith.addf %51, %52 : vector<2x32xf32>
    %54 = math.tanh %53 : vector<2x32xf32>
    %55 = arith.mulf %50, %54 : vector<2x32xf32>
    %56 = vector.extract_strided_slice %15 {offsets = [4, 0], sizes = [2, 128], strides = [1, 1]} : vector<16x128xf32> to vector<2x128xf32>
    %cst_23 = arith.constant dense<0.000000e+00> : vector<2x128xf32>
    %57 = tpu.matmul %55, %0, %cst_23 {dimension_numbers = #tpu.dot_dimension_numbers<[1], [0], [0], [1], [0, 0, 1, 1], [], []>} : vector<2x32xf32>, vector<32x128xf32>, vector<2x128xf32> -> vector<2x128xf32>
    %58 = arith.addf %56, %57 : vector<2x128xf32>
    %59 = arith.addf %58, %5 : vector<2x128xf32>
    %60 = arith.negf %59 : vector<2x128xf32>
    %61 = math.exp %60 : vector<2x128xf32>
    %cst_24 = arith.constant 1.000000e+00 : f32
    %62 = vector.broadcast %cst_24 : f32 to vector<2x128xf32>
    %63 = arith.addf %62, %61 : vector<2x128xf32>
    %64 = arith.divf %62, %63 : vector<2x128xf32>
    %65 = math.tanh %59 : vector<2x128xf32>
    %66 = vector.extract_strided_slice %64 {offsets = [0, 0], sizes = [2, 32], strides = [1, 1]} : vector<2x128xf32> to vector<2x32xf32>
    %67 = vector.extract_strided_slice %64 {offsets = [0, 32], sizes = [2, 32], strides = [1, 1]} : vector<2x128xf32> to vector<2x32xf32>
    %68 = vector.extract_strided_slice %65 {offsets = [0, 64], sizes = [2, 32], strides = [1, 1]} : vector<2x128xf32> to vector<2x32xf32>
    %69 = vector.extract_strided_slice %64 {offsets = [0, 96], sizes = [2, 32], strides = [1, 1]} : vector<2x128xf32> to vector<2x32xf32>
    %70 = arith.mulf %67, %53 : vector<2x32xf32>
    %71 = arith.mulf %66, %68 : vector<2x32xf32>
    %72 = arith.addf %70, %71 : vector<2x32xf32>
    %73 = math.tanh %72 : vector<2x32xf32>
    %74 = arith.mulf %69, %73 : vector<2x32xf32>
    %75 = vector.extract_strided_slice %15 {offsets = [6, 0], sizes = [2, 128], strides = [1, 1]} : vector<16x128xf32> to vector<2x128xf32>
    %cst_25 = arith.constant dense<0.000000e+00> : vector<2x128xf32>
    %76 = tpu.matmul %74, %0, %cst_25 {dimension_numbers = #tpu.dot_dimension_numbers<[1], [0], [0], [1], [0, 0, 1, 1], [], []>} : vector<2x32xf32>, vector<32x128xf32>, vector<2x128xf32> -> vector<2x128xf32>
    %77 = arith.addf %75, %76 : vector<2x128xf32>
    %78 = arith.addf %77, %5 : vector<2x128xf32>
    %79 = arith.negf %78 : vector<2x128xf32>
    %80 = math.exp %79 : vector<2x128xf32>
    %cst_26 = arith.constant 1.000000e+00 : f32
    %81 = vector.broadcast %cst_26 : f32 to vector<2x128xf32>
    %82 = arith.addf %81, %80 : vector<2x128xf32>
    %83 = arith.divf %81, %82 : vector<2x128xf32>
    %84 = math.tanh %78 : vector<2x128xf32>
    %85 = vector.extract_strided_slice %83 {offsets = [0, 0], sizes = [2, 32], strides = [1, 1]} : vector<2x128xf32> to vector<2x32xf32>
    %86 = vector.extract_strided_slice %83 {offsets = [0, 32], sizes = [2, 32], strides = [1, 1]} : vector<2x128xf32> to vector<2x32xf32>
    %87 = vector.extract_strided_slice %84 {offsets = [0, 64], sizes = [2, 32], strides = [1, 1]} : vector<2x128xf32> to vector<2x32xf32>
    %88 = vector.extract_strided_slice %83 {offsets = [0, 96], sizes = [2, 32], strides = [1, 1]} : vector<2x128xf32> to vector<2x32xf32>
    %89 = arith.mulf %86, %72 : vector<2x32xf32>
    %90 = arith.mulf %85, %87 : vector<2x32xf32>
    %91 = arith.addf %89, %90 : vector<2x32xf32>
    %92 = math.tanh %91 : vector<2x32xf32>
    %93 = arith.mulf %88, %92 : vector<2x32xf32>
    %94 = vector.extract_strided_slice %15 {offsets = [8, 0], sizes = [2, 128], strides = [1, 1]} : vector<16x128xf32> to vector<2x128xf32>
    %cst_27 = arith.constant dense<0.000000e+00> : vector<2x128xf32>
    %95 = tpu.matmul %93, %0, %cst_27 {dimension_numbers = #tpu.dot_dimension_numbers<[1], [0], [0], [1], [0, 0, 1, 1], [], []>} : vector<2x32xf32>, vector<32x128xf32>, vector<2x128xf32> -> vector<2x128xf32>
    %96 = arith.addf %94, %95 : vector<2x128xf32>
    %97 = arith.addf %96, %5 : vector<2x128xf32>
    %98 = arith.negf %97 : vector<2x128xf32>
    %99 = math.exp %98 : vector<2x128xf32>
    %cst_28 = arith.constant 1.000000e+00 : f32
    %100 = vector.broadcast %cst_28 : f32 to vector<2x128xf32>
    %101 = arith.addf %100, %99 : vector<2x128xf32>
    %102 = arith.divf %100, %101 : vector<2x128xf32>
    %103 = math.tanh %97 : vector<2x128xf32>
    %104 = vector.extract_strided_slice %102 {offsets = [0, 0], sizes = [2, 32], strides = [1, 1]} : vector<2x128xf32> to vector<2x32xf32>
    %105 = vector.extract_strided_slice %102 {offsets = [0, 32], sizes = [2, 32], strides = [1, 1]} : vector<2x128xf32> to vector<2x32xf32>
    %106 = vector.extract_strided_slice %103 {offsets = [0, 64], sizes = [2, 32], strides = [1, 1]} : vector<2x128xf32> to vector<2x32xf32>
    %107 = vector.extract_strided_slice %102 {offsets = [0, 96], sizes = [2, 32], strides = [1, 1]} : vector<2x128xf32> to vector<2x32xf32>
    %108 = arith.mulf %105, %91 : vector<2x32xf32>
    %109 = arith.mulf %104, %106 : vector<2x32xf32>
    %110 = arith.addf %108, %109 : vector<2x32xf32>
    %111 = math.tanh %110 : vector<2x32xf32>
    %112 = arith.mulf %107, %111 : vector<2x32xf32>
    %113 = vector.extract_strided_slice %15 {offsets = [10, 0], sizes = [2, 128], strides = [1, 1]} : vector<16x128xf32> to vector<2x128xf32>
    %cst_29 = arith.constant dense<0.000000e+00> : vector<2x128xf32>
    %114 = tpu.matmul %112, %0, %cst_29 {dimension_numbers = #tpu.dot_dimension_numbers<[1], [0], [0], [1], [0, 0, 1, 1], [], []>} : vector<2x32xf32>, vector<32x128xf32>, vector<2x128xf32> -> vector<2x128xf32>
    %115 = arith.addf %113, %114 : vector<2x128xf32>
    %116 = arith.addf %115, %5 : vector<2x128xf32>
    %117 = arith.negf %116 : vector<2x128xf32>
    %118 = math.exp %117 : vector<2x128xf32>
    %cst_30 = arith.constant 1.000000e+00 : f32
    %119 = vector.broadcast %cst_30 : f32 to vector<2x128xf32>
    %120 = arith.addf %119, %118 : vector<2x128xf32>
    %121 = arith.divf %119, %120 : vector<2x128xf32>
    %122 = math.tanh %116 : vector<2x128xf32>
    %123 = vector.extract_strided_slice %121 {offsets = [0, 0], sizes = [2, 32], strides = [1, 1]} : vector<2x128xf32> to vector<2x32xf32>
    %124 = vector.extract_strided_slice %121 {offsets = [0, 32], sizes = [2, 32], strides = [1, 1]} : vector<2x128xf32> to vector<2x32xf32>
    %125 = vector.extract_strided_slice %122 {offsets = [0, 64], sizes = [2, 32], strides = [1, 1]} : vector<2x128xf32> to vector<2x32xf32>
    %126 = vector.extract_strided_slice %121 {offsets = [0, 96], sizes = [2, 32], strides = [1, 1]} : vector<2x128xf32> to vector<2x32xf32>
    %127 = arith.mulf %124, %110 : vector<2x32xf32>
    %128 = arith.mulf %123, %125 : vector<2x32xf32>
    %129 = arith.addf %127, %128 : vector<2x32xf32>
    %130 = math.tanh %129 : vector<2x32xf32>
    %131 = arith.mulf %126, %130 : vector<2x32xf32>
    %132 = vector.extract_strided_slice %15 {offsets = [12, 0], sizes = [2, 128], strides = [1, 1]} : vector<16x128xf32> to vector<2x128xf32>
    %cst_31 = arith.constant dense<0.000000e+00> : vector<2x128xf32>
    %133 = tpu.matmul %131, %0, %cst_31 {dimension_numbers = #tpu.dot_dimension_numbers<[1], [0], [0], [1], [0, 0, 1, 1], [], []>} : vector<2x32xf32>, vector<32x128xf32>, vector<2x128xf32> -> vector<2x128xf32>
    %134 = arith.addf %132, %133 : vector<2x128xf32>
    %135 = arith.addf %134, %5 : vector<2x128xf32>
    %136 = arith.negf %135 : vector<2x128xf32>
    %137 = math.exp %136 : vector<2x128xf32>
    %cst_32 = arith.constant 1.000000e+00 : f32
    %138 = vector.broadcast %cst_32 : f32 to vector<2x128xf32>
    %139 = arith.addf %138, %137 : vector<2x128xf32>
    %140 = arith.divf %138, %139 : vector<2x128xf32>
    %141 = math.tanh %135 : vector<2x128xf32>
    %142 = vector.extract_strided_slice %140 {offsets = [0, 0], sizes = [2, 32], strides = [1, 1]} : vector<2x128xf32> to vector<2x32xf32>
    %143 = vector.extract_strided_slice %140 {offsets = [0, 32], sizes = [2, 32], strides = [1, 1]} : vector<2x128xf32> to vector<2x32xf32>
    %144 = vector.extract_strided_slice %141 {offsets = [0, 64], sizes = [2, 32], strides = [1, 1]} : vector<2x128xf32> to vector<2x32xf32>
    %145 = vector.extract_strided_slice %140 {offsets = [0, 96], sizes = [2, 32], strides = [1, 1]} : vector<2x128xf32> to vector<2x32xf32>
    %146 = arith.mulf %143, %129 : vector<2x32xf32>
    %147 = arith.mulf %142, %144 : vector<2x32xf32>
    %148 = arith.addf %146, %147 : vector<2x32xf32>
    %149 = math.tanh %148 : vector<2x32xf32>
    %150 = arith.mulf %145, %149 : vector<2x32xf32>
    %151 = vector.extract_strided_slice %15 {offsets = [14, 0], sizes = [2, 128], strides = [1, 1]} : vector<16x128xf32> to vector<2x128xf32>
    %cst_33 = arith.constant dense<0.000000e+00> : vector<2x128xf32>
    %152 = tpu.matmul %150, %0, %cst_33 {dimension_numbers = #tpu.dot_dimension_numbers<[1], [0], [0], [1], [0, 0, 1, 1], [], []>} : vector<2x32xf32>, vector<32x128xf32>, vector<2x128xf32> -> vector<2x128xf32>
    %153 = arith.addf %151, %152 : vector<2x128xf32>
    %154 = arith.addf %153, %5 : vector<2x128xf32>
    %155 = arith.negf %154 : vector<2x128xf32>
    %156 = math.exp %155 : vector<2x128xf32>
    %cst_34 = arith.constant 1.000000e+00 : f32
    %157 = vector.broadcast %cst_34 : f32 to vector<2x128xf32>
    %158 = arith.addf %157, %156 : vector<2x128xf32>
    %159 = arith.divf %157, %158 : vector<2x128xf32>
    %160 = math.tanh %154 : vector<2x128xf32>
    %161 = vector.extract_strided_slice %159 {offsets = [0, 0], sizes = [2, 32], strides = [1, 1]} : vector<2x128xf32> to vector<2x32xf32>
    %162 = vector.extract_strided_slice %159 {offsets = [0, 32], sizes = [2, 32], strides = [1, 1]} : vector<2x128xf32> to vector<2x32xf32>
    %163 = vector.extract_strided_slice %160 {offsets = [0, 64], sizes = [2, 32], strides = [1, 1]} : vector<2x128xf32> to vector<2x32xf32>
    %164 = vector.extract_strided_slice %159 {offsets = [0, 96], sizes = [2, 32], strides = [1, 1]} : vector<2x128xf32> to vector<2x32xf32>
    %165 = arith.mulf %162, %148 : vector<2x32xf32>
    %166 = arith.mulf %161, %163 : vector<2x32xf32>
    %167 = arith.addf %165, %166 : vector<2x32xf32>
    %168 = math.tanh %167 : vector<2x32xf32>
    %169 = arith.mulf %164, %168 : vector<2x32xf32>
    %170 = vector.extract_strided_slice %12 {offsets = [14, 0], sizes = [2, 4], strides = [1, 1]} : vector<16x4xf32> to vector<2x4xf32>
    %171 = tpu.concatenate %170, %169 in 1 : vector<2x4xf32>, vector<2x32xf32> -> vector<2x36xf32>
    %cst_35 = arith.constant dense<0.000000e+00> : vector<2x128xf32>
    %172 = tpu.matmul %171, %1, %cst_35 {dimension_numbers = #tpu.dot_dimension_numbers<[1], [0], [0], [1], [0, 0, 1, 1], [], []>} : vector<2x36xf32>, vector<36x128xf32>, vector<2x128xf32> -> vector<2x128xf32>
    %173 = arith.addf %172, %8 : vector<2x128xf32>
    %174 = arith.negf %173 : vector<2x128xf32>
    %175 = math.exp %174 : vector<2x128xf32>
    %cst_36 = arith.constant 1.000000e+00 : f32
    %176 = vector.broadcast %cst_36 : f32 to vector<2x128xf32>
    %177 = arith.addf %176, %175 : vector<2x128xf32>
    %178 = arith.divf %176, %177 : vector<2x128xf32>
    %179 = math.tanh %173 : vector<2x128xf32>
    %180 = vector.extract_strided_slice %178 {offsets = [0, 0], sizes = [2, 32], strides = [1, 1]} : vector<2x128xf32> to vector<2x32xf32>
    %181 = vector.extract_strided_slice %178 {offsets = [0, 32], sizes = [2, 32], strides = [1, 1]} : vector<2x128xf32> to vector<2x32xf32>
    %182 = vector.extract_strided_slice %179 {offsets = [0, 64], sizes = [2, 32], strides = [1, 1]} : vector<2x128xf32> to vector<2x32xf32>
    %183 = vector.extract_strided_slice %178 {offsets = [0, 96], sizes = [2, 32], strides = [1, 1]} : vector<2x128xf32> to vector<2x32xf32>
    %184 = arith.mulf %181, %167 : vector<2x32xf32>
    %185 = arith.mulf %180, %182 : vector<2x32xf32>
    %186 = arith.addf %184, %185 : vector<2x32xf32>
    %187 = math.tanh %186 : vector<2x32xf32>
    %188 = arith.mulf %183, %187 : vector<2x32xf32>
    %cst_37 = arith.constant dense<0.000000e+00> : vector<2x4xf32>
    %189 = tpu.matmul %188, %2, %cst_37 {dimension_numbers = #tpu.dot_dimension_numbers<[1], [0], [0], [1], [0, 0, 1, 1], [], []>} : vector<2x32xf32>, vector<32x4xf32>, vector<2x4xf32> -> vector<2x4xf32>
    %190 = arith.addf %189, %11 : vector<2x4xf32>
    %c0_38 = arith.constant 0 : index
    %191 = memref.load %arg0[%c0_38] : memref<8xi32, #tpu.memory_space<smem>>
    %c0_i32 = arith.constant 0 : i32
    %192 = arith.cmpi ne, %191, %c0_i32 : i32
    %193 = arith.extui %192 : i1 to i32
    %194 = arith.sitofp %193 : i32 to f32
    %195 = vector.extract_strided_slice %13 {offsets = [0, 0], sizes = [2, 4], strides = [1, 1]} : vector<16x4xf32> to vector<2x4xf32>
    %196 = vector.broadcast %194 : f32 to vector<2x4xf32>
    %197 = arith.mulf %196, %195 : vector<2x4xf32>
    %cst_39 = arith.constant 1.000000e+00 : f32
    %198 = arith.subf %cst_39, %194 : f32
    %199 = vector.broadcast %198 : f32 to vector<2x4xf32>
    %200 = arith.mulf %199, %190 : vector<2x4xf32>
    %201 = arith.addf %197, %200 : vector<2x4xf32>
    %202 = tpu.concatenate %201, %188 in 1 : vector<2x4xf32>, vector<2x32xf32> -> vector<2x36xf32>
    %cst_40 = arith.constant dense<0.000000e+00> : vector<2x128xf32>
    %203 = tpu.matmul %202, %1, %cst_40 {dimension_numbers = #tpu.dot_dimension_numbers<[1], [0], [0], [1], [0, 0, 1, 1], [], []>} : vector<2x36xf32>, vector<36x128xf32>, vector<2x128xf32> -> vector<2x128xf32>
    %204 = arith.addf %203, %8 : vector<2x128xf32>
    %205 = arith.negf %204 : vector<2x128xf32>
    %206 = math.exp %205 : vector<2x128xf32>
    %cst_41 = arith.constant 1.000000e+00 : f32
    %207 = vector.broadcast %cst_41 : f32 to vector<2x128xf32>
    %208 = arith.addf %207, %206 : vector<2x128xf32>
    %209 = arith.divf %207, %208 : vector<2x128xf32>
    %210 = math.tanh %204 : vector<2x128xf32>
    %211 = vector.extract_strided_slice %209 {offsets = [0, 0], sizes = [2, 32], strides = [1, 1]} : vector<2x128xf32> to vector<2x32xf32>
    %212 = vector.extract_strided_slice %209 {offsets = [0, 32], sizes = [2, 32], strides = [1, 1]} : vector<2x128xf32> to vector<2x32xf32>
    %213 = vector.extract_strided_slice %210 {offsets = [0, 64], sizes = [2, 32], strides = [1, 1]} : vector<2x128xf32> to vector<2x32xf32>
    %214 = vector.extract_strided_slice %209 {offsets = [0, 96], sizes = [2, 32], strides = [1, 1]} : vector<2x128xf32> to vector<2x32xf32>
    %215 = arith.mulf %212, %186 : vector<2x32xf32>
    %216 = arith.mulf %211, %213 : vector<2x32xf32>
    %217 = arith.addf %215, %216 : vector<2x32xf32>
    %218 = math.tanh %217 : vector<2x32xf32>
    %219 = arith.mulf %214, %218 : vector<2x32xf32>
    %cst_42 = arith.constant dense<0.000000e+00> : vector<2x4xf32>
    %220 = tpu.matmul %219, %2, %cst_42 {dimension_numbers = #tpu.dot_dimension_numbers<[1], [0], [0], [1], [0, 0, 1, 1], [], []>} : vector<2x32xf32>, vector<32x4xf32>, vector<2x4xf32> -> vector<2x4xf32>
    %221 = arith.addf %220, %11 : vector<2x4xf32>
    %c1 = arith.constant 1 : index
    %222 = memref.load %arg0[%c1] : memref<8xi32, #tpu.memory_space<smem>>
    %c0_i32_43 = arith.constant 0 : i32
    %223 = arith.cmpi ne, %222, %c0_i32_43 : i32
    %224 = arith.extui %223 : i1 to i32
    %225 = arith.sitofp %224 : i32 to f32
    %226 = vector.extract_strided_slice %13 {offsets = [2, 0], sizes = [2, 4], strides = [1, 1]} : vector<16x4xf32> to vector<2x4xf32>
    %227 = vector.broadcast %225 : f32 to vector<2x4xf32>
    %228 = arith.mulf %227, %226 : vector<2x4xf32>
    %cst_44 = arith.constant 1.000000e+00 : f32
    %229 = arith.subf %cst_44, %225 : f32
    %230 = vector.broadcast %229 : f32 to vector<2x4xf32>
    %231 = arith.mulf %230, %221 : vector<2x4xf32>
    %232 = arith.addf %228, %231 : vector<2x4xf32>
    %233 = tpu.concatenate %232, %219 in 1 : vector<2x4xf32>, vector<2x32xf32> -> vector<2x36xf32>
    %cst_45 = arith.constant dense<0.000000e+00> : vector<2x128xf32>
    %234 = tpu.matmul %233, %1, %cst_45 {dimension_numbers = #tpu.dot_dimension_numbers<[1], [0], [0], [1], [0, 0, 1, 1], [], []>} : vector<2x36xf32>, vector<36x128xf32>, vector<2x128xf32> -> vector<2x128xf32>
    %235 = arith.addf %234, %8 : vector<2x128xf32>
    %236 = arith.negf %235 : vector<2x128xf32>
    %237 = math.exp %236 : vector<2x128xf32>
    %cst_46 = arith.constant 1.000000e+00 : f32
    %238 = vector.broadcast %cst_46 : f32 to vector<2x128xf32>
    %239 = arith.addf %238, %237 : vector<2x128xf32>
    %240 = arith.divf %238, %239 : vector<2x128xf32>
    %241 = math.tanh %235 : vector<2x128xf32>
    %242 = vector.extract_strided_slice %240 {offsets = [0, 0], sizes = [2, 32], strides = [1, 1]} : vector<2x128xf32> to vector<2x32xf32>
    %243 = vector.extract_strided_slice %240 {offsets = [0, 32], sizes = [2, 32], strides = [1, 1]} : vector<2x128xf32> to vector<2x32xf32>
    %244 = vector.extract_strided_slice %241 {offsets = [0, 64], sizes = [2, 32], strides = [1, 1]} : vector<2x128xf32> to vector<2x32xf32>
    %245 = vector.extract_strided_slice %240 {offsets = [0, 96], sizes = [2, 32], strides = [1, 1]} : vector<2x128xf32> to vector<2x32xf32>
    %246 = arith.mulf %243, %217 : vector<2x32xf32>
    %247 = arith.mulf %242, %244 : vector<2x32xf32>
    %248 = arith.addf %246, %247 : vector<2x32xf32>
    %249 = math.tanh %248 : vector<2x32xf32>
    %250 = arith.mulf %245, %249 : vector<2x32xf32>
    %cst_47 = arith.constant dense<0.000000e+00> : vector<2x4xf32>
    %251 = tpu.matmul %250, %2, %cst_47 {dimension_numbers = #tpu.dot_dimension_numbers<[1], [0], [0], [1], [0, 0, 1, 1], [], []>} : vector<2x32xf32>, vector<32x4xf32>, vector<2x4xf32> -> vector<2x4xf32>
    %252 = arith.addf %251, %11 : vector<2x4xf32>
    %c2 = arith.constant 2 : index
    %253 = memref.load %arg0[%c2] : memref<8xi32, #tpu.memory_space<smem>>
    %c0_i32_48 = arith.constant 0 : i32
    %254 = arith.cmpi ne, %253, %c0_i32_48 : i32
    %255 = arith.extui %254 : i1 to i32
    %256 = arith.sitofp %255 : i32 to f32
    %257 = vector.extract_strided_slice %13 {offsets = [4, 0], sizes = [2, 4], strides = [1, 1]} : vector<16x4xf32> to vector<2x4xf32>
    %258 = vector.broadcast %256 : f32 to vector<2x4xf32>
    %259 = arith.mulf %258, %257 : vector<2x4xf32>
    %cst_49 = arith.constant 1.000000e+00 : f32
    %260 = arith.subf %cst_49, %256 : f32
    %261 = vector.broadcast %260 : f32 to vector<2x4xf32>
    %262 = arith.mulf %261, %252 : vector<2x4xf32>
    %263 = arith.addf %259, %262 : vector<2x4xf32>
    %264 = tpu.concatenate %263, %250 in 1 : vector<2x4xf32>, vector<2x32xf32> -> vector<2x36xf32>
    %cst_50 = arith.constant dense<0.000000e+00> : vector<2x128xf32>
    %265 = tpu.matmul %264, %1, %cst_50 {dimension_numbers = #tpu.dot_dimension_numbers<[1], [0], [0], [1], [0, 0, 1, 1], [], []>} : vector<2x36xf32>, vector<36x128xf32>, vector<2x128xf32> -> vector<2x128xf32>
    %266 = arith.addf %265, %8 : vector<2x128xf32>
    %267 = arith.negf %266 : vector<2x128xf32>
    %268 = math.exp %267 : vector<2x128xf32>
    %cst_51 = arith.constant 1.000000e+00 : f32
    %269 = vector.broadcast %cst_51 : f32 to vector<2x128xf32>
    %270 = arith.addf %269, %268 : vector<2x128xf32>
    %271 = arith.divf %269, %270 : vector<2x128xf32>
    %272 = math.tanh %266 : vector<2x128xf32>
    %273 = vector.extract_strided_slice %271 {offsets = [0, 0], sizes = [2, 32], strides = [1, 1]} : vector<2x128xf32> to vector<2x32xf32>
    %274 = vector.extract_strided_slice %271 {offsets = [0, 32], sizes = [2, 32], strides = [1, 1]} : vector<2x128xf32> to vector<2x32xf32>
    %275 = vector.extract_strided_slice %272 {offsets = [0, 64], sizes = [2, 32], strides = [1, 1]} : vector<2x128xf32> to vector<2x32xf32>
    %276 = vector.extract_strided_slice %271 {offsets = [0, 96], sizes = [2, 32], strides = [1, 1]} : vector<2x128xf32> to vector<2x32xf32>
    %277 = arith.mulf %274, %248 : vector<2x32xf32>
    %278 = arith.mulf %273, %275 : vector<2x32xf32>
    %279 = arith.addf %277, %278 : vector<2x32xf32>
    %280 = math.tanh %279 : vector<2x32xf32>
    %281 = arith.mulf %276, %280 : vector<2x32xf32>
    %cst_52 = arith.constant dense<0.000000e+00> : vector<2x4xf32>
    %282 = tpu.matmul %281, %2, %cst_52 {dimension_numbers = #tpu.dot_dimension_numbers<[1], [0], [0], [1], [0, 0, 1, 1], [], []>} : vector<2x32xf32>, vector<32x4xf32>, vector<2x4xf32> -> vector<2x4xf32>
    %283 = arith.addf %282, %11 : vector<2x4xf32>
    %c3 = arith.constant 3 : index
    %284 = memref.load %arg0[%c3] : memref<8xi32, #tpu.memory_space<smem>>
    %c0_i32_53 = arith.constant 0 : i32
    %285 = arith.cmpi ne, %284, %c0_i32_53 : i32
    %286 = arith.extui %285 : i1 to i32
    %287 = arith.sitofp %286 : i32 to f32
    %288 = vector.extract_strided_slice %13 {offsets = [6, 0], sizes = [2, 4], strides = [1, 1]} : vector<16x4xf32> to vector<2x4xf32>
    %289 = vector.broadcast %287 : f32 to vector<2x4xf32>
    %290 = arith.mulf %289, %288 : vector<2x4xf32>
    %cst_54 = arith.constant 1.000000e+00 : f32
    %291 = arith.subf %cst_54, %287 : f32
    %292 = vector.broadcast %291 : f32 to vector<2x4xf32>
    %293 = arith.mulf %292, %283 : vector<2x4xf32>
    %294 = arith.addf %290, %293 : vector<2x4xf32>
    %295 = tpu.concatenate %294, %281 in 1 : vector<2x4xf32>, vector<2x32xf32> -> vector<2x36xf32>
    %cst_55 = arith.constant dense<0.000000e+00> : vector<2x128xf32>
    %296 = tpu.matmul %295, %1, %cst_55 {dimension_numbers = #tpu.dot_dimension_numbers<[1], [0], [0], [1], [0, 0, 1, 1], [], []>} : vector<2x36xf32>, vector<36x128xf32>, vector<2x128xf32> -> vector<2x128xf32>
    %297 = arith.addf %296, %8 : vector<2x128xf32>
    %298 = arith.negf %297 : vector<2x128xf32>
    %299 = math.exp %298 : vector<2x128xf32>
    %cst_56 = arith.constant 1.000000e+00 : f32
    %300 = vector.broadcast %cst_56 : f32 to vector<2x128xf32>
    %301 = arith.addf %300, %299 : vector<2x128xf32>
    %302 = arith.divf %300, %301 : vector<2x128xf32>
    %303 = math.tanh %297 : vector<2x128xf32>
    %304 = vector.extract_strided_slice %302 {offsets = [0, 0], sizes = [2, 32], strides = [1, 1]} : vector<2x128xf32> to vector<2x32xf32>
    %305 = vector.extract_strided_slice %302 {offsets = [0, 32], sizes = [2, 32], strides = [1, 1]} : vector<2x128xf32> to vector<2x32xf32>
    %306 = vector.extract_strided_slice %303 {offsets = [0, 64], sizes = [2, 32], strides = [1, 1]} : vector<2x128xf32> to vector<2x32xf32>
    %307 = vector.extract_strided_slice %302 {offsets = [0, 96], sizes = [2, 32], strides = [1, 1]} : vector<2x128xf32> to vector<2x32xf32>
    %308 = arith.mulf %305, %279 : vector<2x32xf32>
    %309 = arith.mulf %304, %306 : vector<2x32xf32>
    %310 = arith.addf %308, %309 : vector<2x32xf32>
    %311 = math.tanh %310 : vector<2x32xf32>
    %312 = arith.mulf %307, %311 : vector<2x32xf32>
    %cst_57 = arith.constant dense<0.000000e+00> : vector<2x4xf32>
    %313 = tpu.matmul %312, %2, %cst_57 {dimension_numbers = #tpu.dot_dimension_numbers<[1], [0], [0], [1], [0, 0, 1, 1], [], []>} : vector<2x32xf32>, vector<32x4xf32>, vector<2x4xf32> -> vector<2x4xf32>
    %314 = arith.addf %313, %11 : vector<2x4xf32>
    %c4 = arith.constant 4 : index
    %315 = memref.load %arg0[%c4] : memref<8xi32, #tpu.memory_space<smem>>
    %c0_i32_58 = arith.constant 0 : i32
    %316 = arith.cmpi ne, %315, %c0_i32_58 : i32
    %317 = arith.extui %316 : i1 to i32
    %318 = arith.sitofp %317 : i32 to f32
    %319 = vector.extract_strided_slice %13 {offsets = [8, 0], sizes = [2, 4], strides = [1, 1]} : vector<16x4xf32> to vector<2x4xf32>
    %320 = vector.broadcast %318 : f32 to vector<2x4xf32>
    %321 = arith.mulf %320, %319 : vector<2x4xf32>
    %cst_59 = arith.constant 1.000000e+00 : f32
    %322 = arith.subf %cst_59, %318 : f32
    %323 = vector.broadcast %322 : f32 to vector<2x4xf32>
    %324 = arith.mulf %323, %314 : vector<2x4xf32>
    %325 = arith.addf %321, %324 : vector<2x4xf32>
    %326 = tpu.concatenate %325, %312 in 1 : vector<2x4xf32>, vector<2x32xf32> -> vector<2x36xf32>
    %cst_60 = arith.constant dense<0.000000e+00> : vector<2x128xf32>
    %327 = tpu.matmul %326, %1, %cst_60 {dimension_numbers = #tpu.dot_dimension_numbers<[1], [0], [0], [1], [0, 0, 1, 1], [], []>} : vector<2x36xf32>, vector<36x128xf32>, vector<2x128xf32> -> vector<2x128xf32>
    %328 = arith.addf %327, %8 : vector<2x128xf32>
    %329 = arith.negf %328 : vector<2x128xf32>
    %330 = math.exp %329 : vector<2x128xf32>
    %cst_61 = arith.constant 1.000000e+00 : f32
    %331 = vector.broadcast %cst_61 : f32 to vector<2x128xf32>
    %332 = arith.addf %331, %330 : vector<2x128xf32>
    %333 = arith.divf %331, %332 : vector<2x128xf32>
    %334 = math.tanh %328 : vector<2x128xf32>
    %335 = vector.extract_strided_slice %333 {offsets = [0, 0], sizes = [2, 32], strides = [1, 1]} : vector<2x128xf32> to vector<2x32xf32>
    %336 = vector.extract_strided_slice %333 {offsets = [0, 32], sizes = [2, 32], strides = [1, 1]} : vector<2x128xf32> to vector<2x32xf32>
    %337 = vector.extract_strided_slice %334 {offsets = [0, 64], sizes = [2, 32], strides = [1, 1]} : vector<2x128xf32> to vector<2x32xf32>
    %338 = vector.extract_strided_slice %333 {offsets = [0, 96], sizes = [2, 32], strides = [1, 1]} : vector<2x128xf32> to vector<2x32xf32>
    %339 = arith.mulf %336, %310 : vector<2x32xf32>
    %340 = arith.mulf %335, %337 : vector<2x32xf32>
    %341 = arith.addf %339, %340 : vector<2x32xf32>
    %342 = math.tanh %341 : vector<2x32xf32>
    %343 = arith.mulf %338, %342 : vector<2x32xf32>
    %cst_62 = arith.constant dense<0.000000e+00> : vector<2x4xf32>
    %344 = tpu.matmul %343, %2, %cst_62 {dimension_numbers = #tpu.dot_dimension_numbers<[1], [0], [0], [1], [0, 0, 1, 1], [], []>} : vector<2x32xf32>, vector<32x4xf32>, vector<2x4xf32> -> vector<2x4xf32>
    %345 = arith.addf %344, %11 : vector<2x4xf32>
    %c5 = arith.constant 5 : index
    %346 = memref.load %arg0[%c5] : memref<8xi32, #tpu.memory_space<smem>>
    %c0_i32_63 = arith.constant 0 : i32
    %347 = arith.cmpi ne, %346, %c0_i32_63 : i32
    %348 = arith.extui %347 : i1 to i32
    %349 = arith.sitofp %348 : i32 to f32
    %350 = vector.extract_strided_slice %13 {offsets = [10, 0], sizes = [2, 4], strides = [1, 1]} : vector<16x4xf32> to vector<2x4xf32>
    %351 = vector.broadcast %349 : f32 to vector<2x4xf32>
    %352 = arith.mulf %351, %350 : vector<2x4xf32>
    %cst_64 = arith.constant 1.000000e+00 : f32
    %353 = arith.subf %cst_64, %349 : f32
    %354 = vector.broadcast %353 : f32 to vector<2x4xf32>
    %355 = arith.mulf %354, %345 : vector<2x4xf32>
    %356 = arith.addf %352, %355 : vector<2x4xf32>
    %357 = tpu.concatenate %356, %343 in 1 : vector<2x4xf32>, vector<2x32xf32> -> vector<2x36xf32>
    %cst_65 = arith.constant dense<0.000000e+00> : vector<2x128xf32>
    %358 = tpu.matmul %357, %1, %cst_65 {dimension_numbers = #tpu.dot_dimension_numbers<[1], [0], [0], [1], [0, 0, 1, 1], [], []>} : vector<2x36xf32>, vector<36x128xf32>, vector<2x128xf32> -> vector<2x128xf32>
    %359 = arith.addf %358, %8 : vector<2x128xf32>
    %360 = arith.negf %359 : vector<2x128xf32>
    %361 = math.exp %360 : vector<2x128xf32>
    %cst_66 = arith.constant 1.000000e+00 : f32
    %362 = vector.broadcast %cst_66 : f32 to vector<2x128xf32>
    %363 = arith.addf %362, %361 : vector<2x128xf32>
    %364 = arith.divf %362, %363 : vector<2x128xf32>
    %365 = math.tanh %359 : vector<2x128xf32>
    %366 = vector.extract_strided_slice %364 {offsets = [0, 0], sizes = [2, 32], strides = [1, 1]} : vector<2x128xf32> to vector<2x32xf32>
    %367 = vector.extract_strided_slice %364 {offsets = [0, 32], sizes = [2, 32], strides = [1, 1]} : vector<2x128xf32> to vector<2x32xf32>
    %368 = vector.extract_strided_slice %365 {offsets = [0, 64], sizes = [2, 32], strides = [1, 1]} : vector<2x128xf32> to vector<2x32xf32>
    %369 = vector.extract_strided_slice %364 {offsets = [0, 96], sizes = [2, 32], strides = [1, 1]} : vector<2x128xf32> to vector<2x32xf32>
    %370 = arith.mulf %367, %341 : vector<2x32xf32>
    %371 = arith.mulf %366, %368 : vector<2x32xf32>
    %372 = arith.addf %370, %371 : vector<2x32xf32>
    %373 = math.tanh %372 : vector<2x32xf32>
    %374 = arith.mulf %369, %373 : vector<2x32xf32>
    %cst_67 = arith.constant dense<0.000000e+00> : vector<2x4xf32>
    %375 = tpu.matmul %374, %2, %cst_67 {dimension_numbers = #tpu.dot_dimension_numbers<[1], [0], [0], [1], [0, 0, 1, 1], [], []>} : vector<2x32xf32>, vector<32x4xf32>, vector<2x4xf32> -> vector<2x4xf32>
    %376 = arith.addf %375, %11 : vector<2x4xf32>
    %c6 = arith.constant 6 : index
    %377 = memref.load %arg0[%c6] : memref<8xi32, #tpu.memory_space<smem>>
    %c0_i32_68 = arith.constant 0 : i32
    %378 = arith.cmpi ne, %377, %c0_i32_68 : i32
    %379 = arith.extui %378 : i1 to i32
    %380 = arith.sitofp %379 : i32 to f32
    %381 = vector.extract_strided_slice %13 {offsets = [12, 0], sizes = [2, 4], strides = [1, 1]} : vector<16x4xf32> to vector<2x4xf32>
    %382 = vector.broadcast %380 : f32 to vector<2x4xf32>
    %383 = arith.mulf %382, %381 : vector<2x4xf32>
    %cst_69 = arith.constant 1.000000e+00 : f32
    %384 = arith.subf %cst_69, %380 : f32
    %385 = vector.broadcast %384 : f32 to vector<2x4xf32>
    %386 = arith.mulf %385, %376 : vector<2x4xf32>
    %387 = arith.addf %383, %386 : vector<2x4xf32>
    %388 = tpu.concatenate %387, %374 in 1 : vector<2x4xf32>, vector<2x32xf32> -> vector<2x36xf32>
    %cst_70 = arith.constant dense<0.000000e+00> : vector<2x128xf32>
    %389 = tpu.matmul %388, %1, %cst_70 {dimension_numbers = #tpu.dot_dimension_numbers<[1], [0], [0], [1], [0, 0, 1, 1], [], []>} : vector<2x36xf32>, vector<36x128xf32>, vector<2x128xf32> -> vector<2x128xf32>
    %390 = arith.addf %389, %8 : vector<2x128xf32>
    %391 = arith.negf %390 : vector<2x128xf32>
    %392 = math.exp %391 : vector<2x128xf32>
    %cst_71 = arith.constant 1.000000e+00 : f32
    %393 = vector.broadcast %cst_71 : f32 to vector<2x128xf32>
    %394 = arith.addf %393, %392 : vector<2x128xf32>
    %395 = arith.divf %393, %394 : vector<2x128xf32>
    %396 = math.tanh %390 : vector<2x128xf32>
    %397 = vector.extract_strided_slice %395 {offsets = [0, 0], sizes = [2, 32], strides = [1, 1]} : vector<2x128xf32> to vector<2x32xf32>
    %398 = vector.extract_strided_slice %395 {offsets = [0, 32], sizes = [2, 32], strides = [1, 1]} : vector<2x128xf32> to vector<2x32xf32>
    %399 = vector.extract_strided_slice %396 {offsets = [0, 64], sizes = [2, 32], strides = [1, 1]} : vector<2x128xf32> to vector<2x32xf32>
    %400 = vector.extract_strided_slice %395 {offsets = [0, 96], sizes = [2, 32], strides = [1, 1]} : vector<2x128xf32> to vector<2x32xf32>
    %401 = arith.mulf %398, %372 : vector<2x32xf32>
    %402 = arith.mulf %397, %399 : vector<2x32xf32>
    %403 = arith.addf %401, %402 : vector<2x32xf32>
    %404 = math.tanh %403 : vector<2x32xf32>
    %405 = arith.mulf %400, %404 : vector<2x32xf32>
    %cst_72 = arith.constant dense<0.000000e+00> : vector<2x4xf32>
    %406 = tpu.matmul %405, %2, %cst_72 {dimension_numbers = #tpu.dot_dimension_numbers<[1], [0], [0], [1], [0, 0, 1, 1], [], []>} : vector<2x32xf32>, vector<32x4xf32>, vector<2x4xf32> -> vector<2x4xf32>
    %407 = arith.addf %406, %11 : vector<2x4xf32>
    %408 = tpu.concatenate %190, %221, %252, %283, %314, %345, %376, %407 in 1 : vector<2x4xf32>, vector<2x4xf32>, vector<2x4xf32>, vector<2x4xf32>, vector<2x4xf32>, vector<2x4xf32>, vector<2x4xf32>, vector<2x4xf32> -> vector<2x32xf32>
    %c0_73 = arith.constant 0 : index
    %c0_74 = arith.constant 0 : index
    %409 = vector.load %arg10[%c0_73, %c0_74] : memref<2x32xf32, #tpu.memory_space<vmem>>, vector<2x32xf32>
    tpu.vector_store %arg10[%c0_73, %c0_74], %408 {strides = array<i32>} : memref<2x32xf32, #tpu.memory_space<vmem>>, vector<2x32xf32>,
    return
  }
}

</mosaic_0001>

<llo_original>
// kernel: tpu_custom_call.1
$region0: #{tpu_custom_call.1}
  #allocation0 [shape = 'u32[]', space=smem, size = 0x4, offset = 0x4, fixed_abs, tag = 'smem constant byte address 0x4 - core index']
  #allocation1 [shape = 'u32[144,128]{1,0:T(1,128)}', space=vmem, size = 0x12000, scoped, tag = 'internal scratch']
  %s0 = inlined_call_operand.vmem [shape: s32[8], index: 0, kind: input, shape index: {}]
  %s1 = inlined_call_operand.vmem [shape: f32[16,4], index: 1, kind: input, shape index: {}]
  %s2 = inlined_call_operand.vmem [shape: f32[16,4], index: 2, kind: input, shape index: {}]
  %s3 = inlined_call_operand.vmem [shape: f32[4,128], index: 3, kind: input, shape index: {}]
  %s4 = inlined_call_operand.vmem [shape: f32[32,128], index: 4, kind: input, shape index: {}]
  %s5 = inlined_call_operand.vmem [shape: f32[1,128], index: 5, kind: input, shape index: {}]
  %s6 = inlined_call_operand.vmem [shape: f32[36,128], index: 6, kind: input, shape index: {}]
  %s7 = inlined_call_operand.vmem [shape: f32[1,128], index: 7, kind: input, shape index: {}]
  %s8 = inlined_call_operand.vmem [shape: f32[32,4], index: 8, kind: input, shape index: {}]
  %s9 = inlined_call_operand.vmem [shape: f32[1,4], index: 9, kind: input, shape index: {}]
  %s10 = inlined_call_operand.hbm [shape: f32[2,32], index: 10, kind: output, shape index: {}]
  %s11 = sld [smem:[#allocation0]]
  $region54: #{tpu_custom_call.1} parent=0
    _
  %s13 = ssub.s32 1, %s11
  %s14 = scalar_select 0, %s13, %s11
  $region1: #{tpu_custom_call.1} parent=0
    #allocation2 [shape = 'u8[512]{0}', space=smem, size = 0x200, scoped, tag = 'input window, operand 0, single buffered']
    #allocation3 [shape = 's32[1]{0}', space=sflag, size = 0x4, scoped, tag = 'scoped memory for tpu_custom_call.1']
    #allocation4 [shape = 's32[1]{0}', space=sflag, size = 0x4, scoped, tag = 'scoped memory for tpu_custom_call.1']
    #allocation5 [shape = 'u8[1024]{0}', space=vmem, size = 0x400, scoped, tag = 'output window, operand 0, single buffered']
    %15 = vsyncpa [#allocation4], 0
    %16 = vsyncpa [#allocation3], 0
    // Predicated region
    $region2: #{tpu_custom_call.1} parent=1 // pred_check
      _
    $region3: #{tpu_custom_call.1} parent=1 // pred_check_branch
      %18 = sbr.rel (0) target = $region5
    $region4: #{tpu_custom_call.1} parent=1 // pred_region
      %s20 = ssub.s32 16, 16
      %21 = vsyncadd [#allocation4], %s20
      %s23 = sshll.u32 %s0, 4
      %s24 = int_to_ptr.vmem [resolvable:$true] %s23
      %26 = dma.vmem_to_smem %s24, 16, [#allocation2], [#allocation4]
    $region5: #{tpu_custom_call.1} parent=1 // pred_fallthru
      _
    // Predicated region
    $region6: #{tpu_custom_call.1} parent=1 // pred_check
      _
    $region7: #{tpu_custom_call.1} parent=1 // pred_check_branch
      %28 = sbr.rel (0) target = $region9
    $region8: #{tpu_custom_call.1} parent=1 // pred_region
      _
    $region9: #{tpu_custom_call.1} parent=1 // pred_fallthru
      _
    // Predicated region
    $region10: #{tpu_custom_call.1} parent=1 // pred_check
      _
    $region11: #{tpu_custom_call.1} parent=1 // pred_check_branch
      %30 = sbr.rel (0) target = $region13
    $region12: #{tpu_custom_call.1} parent=1 // pred_region
      _
    $region13: #{tpu_custom_call.1} parent=1 // pred_fallthru
      _
    // Predicated region
    $region14: #{tpu_custom_call.1} parent=1 // pred_check
      _
    $region15: #{tpu_custom_call.1} parent=1 // pred_check_branch
      %32 = sbr.rel (0) target = $region17
    $region16: #{tpu_custom_call.1} parent=1 // pred_region
      _
    $region17: #{tpu_custom_call.1} parent=1 // pred_fallthru
      _
    // Predicated region
    $region18: #{tpu_custom_call.1} parent=1 // pred_check
      _
    $region19: #{tpu_custom_call.1} parent=1 // pred_check_branch
      %34 = sbr.rel (0) target = $region21
    $region20: #{tpu_custom_call.1} parent=1 // pred_region
      _
    $region21: #{tpu_custom_call.1} parent=1 // pred_fallthru
      _
    // Predicated region
    $region22: #{tpu_custom_call.1} parent=1 // pred_check
      _
    $region23: #{tpu_custom_call.1} parent=1 // pred_check_branch
      %36 = sbr.rel (0) target = $region25
    $region24: #{tpu_custom_call.1} parent=1 // pred_region
      _
    $region25: #{tpu_custom_call.1} parent=1 // pred_fallthru
      _
    // Predicated region
    $region26: #{tpu_custom_call.1} parent=1 // pred_check
      _
    $region27: #{tpu_custom_call.1} parent=1 // pred_check_branch
      %38 = sbr.rel (0) target = $region29
    $region28: #{tpu_custom_call.1} parent=1 // pred_region
      _
    $region29: #{tpu_custom_call.1} parent=1 // pred_fallthru
      _
    // Predicated region
    $region30: #{tpu_custom_call.1} parent=1 // pred_check
      _
    $region31: #{tpu_custom_call.1} parent=1 // pred_check_branch
      %40 = sbr.rel (0) target = $region33
    $region32: #{tpu_custom_call.1} parent=1 // pred_region
      _
    $region33: #{tpu_custom_call.1} parent=1 // pred_fallthru
      _
    // Predicated region
    $region34: #{tpu_custom_call.1} parent=1 // pred_check
      _
    $region35: #{tpu_custom_call.1} parent=1 // pred_check_branch
      %42 = sbr.rel (0) target = $region37
    $region36: #{tpu_custom_call.1} parent=1 // pred_region
      _
    $region37: #{tpu_custom_call.1} parent=1 // pred_fallthru
      _
    // Predicated region
    $region38: #{tpu_custom_call.1} parent=1 // pred_check
      _
    $region39: #{tpu_custom_call.1} parent=1 // pred_check_branch
      %44 = sbr.rel (0) target = $region41
    $region40: #{tpu_custom_call.1} parent=1 // pred_region
      _
    $region41: #{tpu_custom_call.1} parent=1 // pred_fallthru
      _
    // Predicated region
    $region42: #{tpu_custom_call.1} parent=1 // pred_check
      _
    $region43: #{tpu_custom_call.1} parent=1 // pred_check_branch
      %46 = sbr.rel (0) target = $region45
    $region44: #{tpu_custom_call.1} parent=1 // pred_region
      %47 = dma.done [#allocation4], 16
    $region45: #{tpu_custom_call.1} parent=1 // pred_fallthru
      _
    %48 = sfence
    %v49 = vld [vmem:[%s4] sm:$0xff]
    %v50 = vld [vmem:[%s4 + $0x8] sm:$0xff]
    %v51 = vld [vmem:[%s4 + $0x10] sm:$0xff]
    %v52 = vld [vmem:[%s4 + $0x18] sm:$0xff]
    %v53 = vld [vmem:[%s6] sm:$0xff]
    %v54 = vld [vmem:[%s6 + $0x8] sm:$0xff]
    %v55 = vld [vmem:[%s6 + $0x10] sm:$0xff]
    %v56 = vld [vmem:[%s6 + $0x18] sm:$0xff]
    %v57 = vld [vmem:[%s6 + $0x20] sm:$0xf]
    %v58 = vld [vmem:[%s8] sm:$0xff]
    %v59 = vld [vmem:[%s8 + $0x8] sm:$0xff]
    %v60 = vld [vmem:[%s8 + $0x10] sm:$0xff]
    %v61 = vld [vmem:[%s8 + $0x18] sm:$0xff]
    %v62 = vld [vmem:[%s5] sm:$0x1]
    %v64 = vlaneseq
    %v65 = vshrl.u32 %v64, 7
    %v66 = vsub.s32 0, %v65
    %v67 = vrot.slane %v62, %v66
    %v69 = vld [vmem:[%s7] sm:$0x1]
    %v71 = vlaneseq
    %v72 = vshrl.u32 %v71, 7
    %v73 = vsub.s32 0, %v72
    %v74 = vrot.slane %v69, %v73
    %v76 = vld [vmem:[%s9] sm:$0x1]
    %v78 = vlaneseq
    %v79 = vshrl.u32 %v78, 7
    %v80 = vsub.s32 0, %v79
    %v81 = vrot.slane %v76, %v80
    %v83 = vld [vmem:[%s1] sm:$0xff]
    %v84 = vld [vmem:[%s1 + $0x8] sm:$0xff]
    %v85 = vld [vmem:[%s2] sm:$0xff]
    %v86 = vld [vmem:[%s2 + $0x8] sm:$0xff]
    %v87 = vld [vmem:[%s3] sm:$0xf]
    %vm88 = vcmask 31744
    %v90 = vsel %vm88, %v83, 0
    %v93 = vsel %vm88, %v84, 0
    %vm95 = vcmask 1043456
    %v97 = vsel %vm95, %v87, 0
    %99 = vmatprep.subr.mxu0 0.0
    %100 = vmatpush1.msra.mxu0 %v97
    %101 = vmatprep.subr.mxu0 0.0
    %102 = vmatpush1.msra.mxu0 0.0
    %103 = vmatprep.subr.mxu0 0.0
    %104 = vmatpush1.msra.mxu0 0.0
    %105 = vmatprep.subr.mxu0 0.0
    %106 = vmatpush1.msra.mxu0 0.0
    %107 = vmatprep.subr.mxu0 0.0
    %108 = vmatpush1.msra.mxu0 0.0
    %109 = vmatprep.subr.mxu0 0.0
    %110 = vmatpush1.msra.mxu0 0.0
    %111 = vmatprep.subr.mxu0 0.0
    %112 = vmatpush1.msra.mxu0 0.0
    %113 = vmatprep.subr.mxu0 0.0
    %114 = vmatpush1.msra.mxu0 0.0
    %115 = vmatprep.subr.mxu0 0.0
    %116 = vmatpush1.msra.mxu0 0.0
    %117 = vmatprep.subr.mxu0 0.0
    %118 = vmatpush1.msra.mxu0 0.0
    %119 = vmatprep.subr.mxu0 0.0
    %120 = vmatpush1.msra.mxu0 0.0
    %121 = vmatprep.subr.mxu0 0.0
    %122 = vmatpush1.msra.mxu0 0.0
    %123 = vmatprep.subr.mxu0 0.0
    %124 = vmatpush1.msra.mxu0 0.0
    %125 = vmatprep.subr.mxu0 0.0
    %126 = vmatpush1.msra.mxu0 0.0
    %127 = vmatprep.subr.mxu0 0.0
    %128 = vmatpush1.msra.mxu0 0.0
    %129 = vmatprep.subr.mxu0 0.0
    %130 = vmatpush1.msra.mxu0 0.0
    %131 = vmatprep.subr.mxu0 0.0
    %132 = vmatpush1.msra.mxu0 0.0
    %133 = vmatprep.subr.mxu0 0.0
    %134 = vmatpush1.msra.mxu0 0.0
    %135 = vmatprep.subr.mxu0 0.0
    %136 = vmatpush1.msra.mxu0 0.0
    %137 = vmatprep.subr.mxu0 0.0
    %138 = vmatpush1.msra.mxu0 0.0
    %139 = vmatprep.subr.mxu0 0.0
    %140 = vmatpush1.msra.mxu0 0.0
    %141 = vmatprep.subr.mxu0 0.0
    %142 = vmatpush1.msra.mxu0 0.0
    %143 = vmatprep.subr.mxu0 0.0
    %144 = vmatpush1.msra.mxu0 0.0
    %145 = vmatprep.subr.mxu0 0.0
    %146 = vmatpush1.msra.mxu0 0.0
    %147 = vmatprep.subr.mxu0 0.0
    %148 = vmatpush1.msra.mxu0 0.0
    %149 = vmatprep.subr.mxu0 0.0
    %150 = vmatpush1.msra.mxu0 0.0
    %151 = vmatprep.subr.mxu0 0.0
    %152 = vmatpush1.msra.mxu0 0.0
    %153 = vmatprep.subr.mxu0 0.0
    %154 = vmatpush1.msra.mxu0 0.0
    %155 = vmatprep.subr.mxu0 0.0
    %156 = vmatpush1.msra.mxu0 0.0
    %157 = vmatprep.subr.mxu0 0.0
    %158 = vmatpush1.msra.mxu0 0.0
    %159 = vmatprep.subr.mxu0 0.0
    %160 = vmatpush1.msra.mxu0 0.0
    %161 = vmatprep.subr.mxu0 0.0
    %162 = vmatpush1.msra.mxu0 0.0
    %163 = vmatprep.mubr.f32.mxu0 0.0
    %164 = vmatmul.mubr.f32.gmra.mrb[0].mxu0 %v90
    %v165 = vpop.f32.mrb[0].mxu0
    %v166 = vadd.f32 0.0, %v165
    %v167 = vpop.f32.mrb[0].mxu0
    %168 = vmatprep.mubr.f32.mxu0 0.0
    %169 = vmatmul.mubr.f32.gmra.mrb[0].mxu0 %v93
    %v170 = vpop.f32.mrb[0].mxu0
    %v171 = vadd.f32 0.0, %v170
    %v172 = vpop.f32.mrb[0].mxu0
    %173 = vdwg.mxu0
    %vm174 = vcmask 261120
    %v176 = vsel %vm174, 0.0, 0
    %178 = vmatprep.subr.mxu0 0.0
    %179 = vmatpush1.msra.mxu0 %v49
    %180 = vmatprep.subr.mxu0 0.0
    %181 = vmatpush1.msra.mxu0 %v50
    %182 = vmatprep.subr.mxu0 0.0
    %183 = vmatpush1.msra.mxu0 %v51
    %184 = vmatprep.subr.mxu0 0.0
    %185 = vmatpush1.msra.mxu0 %v52
    %186 = vmatprep.subr.mxu0 0.0
    %187 = vmatpush1.msra.mxu0 0.0
    %188 = vmatprep.subr.mxu0 0.0
    %189 = vmatpush1.msra.mxu0 0.0
    %190 = vmatprep.subr.mxu0 0.0
    %191 = vmatpush1.msra.mxu0 0.0
    %192 = vmatprep.subr.mxu0 0.0
    %193 = vmatpush1.msra.mxu0 0.0
    %194 = vmatprep.subr.mxu0 0.0
    %195 = vmatpush1.msra.mxu0 0.0
    %196 = vmatprep.subr.mxu0 0.0
    %197 = vmatpush1.msra.mxu0 0.0
    %198 = vmatprep.subr.mxu0 0.0
    %199 = vmatpush1.msra.mxu0 0.0
    %200 = vmatprep.subr.mxu0 0.0
    %201 = vmatpush1.msra.mxu0 0.0
    %202 = vmatprep.subr.mxu0 0.0
    %203 = vmatpush1.msra.mxu0 0.0
    %204 = vmatprep.subr.mxu0 0.0
    %205 = vmatpush1.msra.mxu0 0.0
    %206 = vmatprep.subr.mxu0 0.0
    %207 = vmatpush1.msra.mxu0 0.0
    %208 = vmatprep.subr.mxu0 0.0
    %209 = vmatpush1.msra.mxu0 0.0
    %210 = vmatprep.subr.mxu0 0.0
    %211 = vmatpush1.msra.mxu0 0.0
    %212 = vmatprep.subr.mxu0 0.0
    %213 = vmatpush1.msra.mxu0 0.0
    %214 = vmatprep.subr.mxu0 0.0
    %215 = vmatpush1.msra.mxu0 0.0
    %216 = vmatprep.subr.mxu0 0.0
    %217 = vmatpush1.msra.mxu0 0.0
    %218 = vmatprep.subr.mxu0 0.0
    %219 = vmatpush1.msra.mxu0 0.0
    %220 = vmatprep.subr.mxu0 0.0
    %221 = vmatpush1.msra.mxu0 0.0
    %222 = vmatprep.subr.mxu0 0.0
    %223 = vmatpush1.msra.mxu0 0.0
    %224 = vmatprep.subr.mxu0 0.0
    %225 = vmatpush1.msra.mxu0 0.0
    %226 = vmatprep.subr.mxu0 0.0
    %227 = vmatpush1.msra.mxu0 0.0
    %228 = vmatprep.subr.mxu0 0.0
    %229 = vmatpush1.msra.mxu0 0.0
    %230 = vmatprep.subr.mxu0 0.0
    %231 = vmatpush1.msra.mxu0 0.0
    %232 = vmatprep.subr.mxu0 0.0
    %233 = vmatpush1.msra.mxu0 0.0
    %234 = vmatprep.subr.mxu0 0.0
    %235 = vmatpush1.msra.mxu0 0.0
    %236 = vmatprep.subr.mxu0 0.0
    %237 = vmatpush1.msra.mxu0 0.0
    %238 = vmatprep.subr.mxu0 0.0
    %239 = vmatpush1.msra.mxu0 0.0
    %240 = vmatprep.subr.mxu0 0.0
    %241 = vmatpush1.msra.mxu0 0.0
    %242 = vmatprep.mubr.f32.mxu0 0.0
    %243 = vmatmul.mubr.f32.gmra.mrb[0].mxu0 %v176
    %v244 = vpop.f32.mrb[0].mxu0
    %v245 = vadd.f32 0.0, %v244
    %v246 = vpop.f32.mrb[0].mxu0
    %247 = vdwg.mxu0
    %v248 = vadd.f32 %v166, %v245
    %v249 = vadd.f32 %v248, %v67
    %v250 = vxor.u32 %v249, 2147483648
    %v251 = vmul.f32 %v250, 1.442695
    %v252 = vpow.pop %v251
    %v253 = vadd.f32 %v252, 1.0
    %v254 = vrcp.pop %v253
    %v255 = vmul.f32 1.0, %v254
    %v256 = vtanh.pop %v249
    %v257 = vmul.f32 %v255, 0.0
    %259 = vrot.lane.b32.xlu0 %v256, 64
    %v260 = vpop.permute.xlu0 %259
    %v262 = vmul.f32 %v255, %v260
    %264 = vrot.lane.b32.xlu0 %v262, 32
    %v265 = vpop.permute.xlu0 %264
    %v267 = vadd.f32 %v257, %v265
    %v268 = vtanh.pop %v267
    %270 = vrot.lane.b32.xlu0 %v268, 64
    %v271 = vpop.permute.xlu0 %270
    %v273 = vmul.f32 %v255, %v271
    %275 = vrot.lane.b32.xlu0 %v273, 32
    %v276 = vpop.permute.xlu0 %275
    %v277 = vsel %vm174, %v276, 0
    %279 = vmatprep.subr.mxu0 0.0
    %280 = vmatpush1.msra.mxu0 %v49
    %281 = vmatprep.subr.mxu0 0.0
    %282 = vmatpush1.msra.mxu0 %v50
    %283 = vmatprep.subr.mxu0 0.0
    %284 = vmatpush1.msra.mxu0 %v51
    %285 = vmatprep.subr.mxu0 0.0
    %286 = vmatpush1.msra.mxu0 %v52
    %287 = vmatprep.subr.mxu0 0.0
    %288 = vmatpush1.msra.mxu0 0.0
    %289 = vmatprep.subr.mxu0 0.0
    %290 = vmatpush1.msra.mxu0 0.0
    %291 = vmatprep.subr.mxu0 0.0
    %292 = vmatpush1.msra.mxu0 0.0
    %293 = vmatprep.subr.mxu0 0.0
    %294 = vmatpush1.msra.mxu0 0.0
    %295 = vmatprep.subr.mxu0 0.0
    %296 = vmatpush1.msra.mxu0 0.0
    %297 = vmatprep.subr.mxu0 0.0
    %298 = vmatpush1.msra.mxu0 0.0
    %299 = vmatprep.subr.mxu0 0.0
    %300 = vmatpush1.msra.mxu0 0.0
    %301 = vmatprep.subr.mxu0 0.0
    %302 = vmatpush1.msra.mxu0 0.0
    %303 = vmatprep.subr.mxu0 0.0
    %304 = vmatpush1.msra.mxu0 0.0
    %305 = vmatprep.subr.mxu0 0.0
    %306 = vmatpush1.msra.mxu0 0.0
    %307 = vmatprep.subr.mxu0 0.0
    %308 = vmatpush1.msra.mxu0 0.0
    %309 = vmatprep.subr.mxu0 0.0
    %310 = vmatpush1.msra.mxu0 0.0
    %311 = vmatprep.subr.mxu0 0.0
    %312 = vmatpush1.msra.mxu0 0.0
    %313 = vmatprep.subr.mxu0 0.0
    %314 = vmatpush1.msra.mxu0 0.0
    %315 = vmatprep.subr.mxu0 0.0
    %316 = vmatpush1.msra.mxu0 0.0
    %317 = vmatprep.subr.mxu0 0.0
    %318 = vmatpush1.msra.mxu0 0.0
    %319 = vmatprep.subr.mxu0 0.0
    %320 = vmatpush1.msra.mxu0 0.0
    %321 = vmatprep.subr.mxu0 0.0
    %322 = vmatpush1.msra.mxu0 0.0
    %323 = vmatprep.subr.mxu0 0.0
    %324 = vmatpush1.msra.mxu0 0.0
    %325 = vmatprep.subr.mxu0 0.0
    %326 = vmatpush1.msra.mxu0 0.0
    %327 = vmatprep.subr.mxu0 0.0
    %328 = vmatpush1.msra.mxu0 0.0
    %329 = vmatprep.subr.mxu0 0.0
    %330 = vmatpush1.msra.mxu0 0.0
    %331 = vmatprep.subr.mxu0 0.0
    %332 = vmatpush1.msra.mxu0 0.0
    %333 = vmatprep.subr.mxu0 0.0
    %334 = vmatpush1.msra.mxu0 0.0
    %335 = vmatprep.subr.mxu0 0.0
    %336 = vmatpush1.msra.mxu0 0.0
    %337 = vmatprep.subr.mxu0 0.0
    %338 = vmatpush1.msra.mxu0 0.0
    %339 = vmatprep.subr.mxu0 0.0
    %340 = vmatpush1.msra.mxu0 0.0
    %341 = vmatprep.subr.mxu0 0.0
    %342 = vmatpush1.msra.mxu0 0.0
    %343 = vmatprep.mubr.f32.mxu0 0.0
    %344 = vmatmul.mubr.f32.gmra.mrb[0].mxu0 %v277
    %v345 = vpop.f32.mrb[0].mxu0
    %v346 = vadd.f32 0.0, %v345
    %v347 = vpop.f32.mrb[0].mxu0
    %348 = vdwg.mxu0
    %v350 = vrot.slane %v346, 6
    %v352 = vadd.f32 %v166, %v350
    %v353 = vadd.f32 %v352, %v67
    %v354 = vxor.u32 %v353, 2147483648
    %v355 = vmul.f32 %v354, 1.442695
    %v356 = vpow.pop %v355
    %v357 = vadd.f32 %v356, 1.0
    %v358 = vrcp.pop %v357
    %v359 = vmul.f32 1.0, %v358
    %v360 = vtanh.pop %v353
    %v362 = vrot.slane %v267, 6
    %v364 = vmul.f32 %v359, %v362
    %366 = vrot.lane.b32.xlu0 %v360, 64
    %v367 = vpop.permute.xlu0 %366
    %v369 = vmul.f32 %v359, %v367
    %371 = vrot.lane.b32.xlu0 %v369, 32
    %v372 = vpop.permute.xlu0 %371
    %v374 = vadd.f32 %v364, %v372
    %v375 = vtanh.pop %v374
    %377 = vrot.lane.b32.xlu0 %v375, 64
    %v378 = vpop.permute.xlu0 %377
    %v380 = vmul.f32 %v359, %v378
    %v382 = vrot.slane %v380, 2
    %383 = vrot.lane.b32.xlu0 %v382, 32
    %v384 = vpop.permute.xlu0 %383
    %v385 = vsel %vm174, %v384, 0
    %387 = vmatprep.subr.mxu0 0.0
    %388 = vmatpush1.msra.mxu0 %v49
    %389 = vmatprep.subr.mxu0 0.0
    %390 = vmatpush1.msra.mxu0 %v50
    %391 = vmatprep.subr.mxu0 0.0
    %392 = vmatpush1.msra.mxu0 %v51
    %393 = vmatprep.subr.mxu0 0.0
    %394 = vmatpush1.msra.mxu0 %v52
    %395 = vmatprep.subr.mxu0 0.0
    %396 = vmatpush1.msra.mxu0 0.0
    %397 = vmatprep.subr.mxu0 0.0
    %398 = vmatpush1.msra.mxu0 0.0
    %399 = vmatprep.subr.mxu0 0.0
    %400 = vmatpush1.msra.mxu0 0.0
    %401 = vmatprep.subr.mxu0 0.0
    %402 = vmatpush1.msra.mxu0 0.0
    %403 = vmatprep.subr.mxu0 0.0
    %404 = vmatpush1.msra.mxu0 0.0
    %405 = vmatprep.subr.mxu0 0.0
    %406 = vmatpush1.msra.mxu0 0.0
    %407 = vmatprep.subr.mxu0 0.0
    %408 = vmatpush1.msra.mxu0 0.0
    %409 = vmatprep.subr.mxu0 0.0
    %410 = vmatpush1.msra.mxu0 0.0
    %411 = vmatprep.subr.mxu0 0.0
    %412 = vmatpush1.msra.mxu0 0.0
    %413 = vmatprep.subr.mxu0 0.0
    %414 = vmatpush1.msra.mxu0 0.0
    %415 = vmatprep.subr.mxu0 0.0
    %416 = vmatpush1.msra.mxu0 0.0
    %417 = vmatprep.subr.mxu0 0.0
    %418 = vmatpush1.msra.mxu0 0.0
    %419 = vmatprep.subr.mxu0 0.0
    %420 = vmatpush1.msra.mxu0 0.0
    %421 = vmatprep.subr.mxu0 0.0
    %422 = vmatpush1.msra.mxu0 0.0
    %423 = vmatprep.subr.mxu0 0.0
    %424 = vmatpush1.msra.mxu0 0.0
    %425 = vmatprep.subr.mxu0 0.0
    %426 = vmatpush1.msra.mxu0 0.0
    %427 = vmatprep.subr.mxu0 0.0
    %428 = vmatpush1.msra.mxu0 0.0
    %429 = vmatprep.subr.mxu0 0.0
    %430 = vmatpush1.msra.mxu0 0.0
    %431 = vmatprep.subr.mxu0 0.0
    %432 = vmatpush1.msra.mxu0 0.0
    %433 = vmatprep.subr.mxu0 0.0
    %434 = vmatpush1.msra.mxu0 0.0
    %435 = vmatprep.subr.mxu0 0.0
    %436 = vmatpush1.msra.mxu0 0.0
    %437 = vmatprep.subr.mxu0 0.0
    %438 = vmatpush1.msra.mxu0 0.0
    %439 = vmatprep.subr.mxu0 0.0
    %440 = vmatpush1.msra.mxu0 0.0
    %441 = vmatprep.subr.mxu0 0.0
    %442 = vmatpush1.msra.mxu0 0.0
    %443 = vmatprep.subr.mxu0 0.0
    %444 = vmatpush1.msra.mxu0 0.0
    %445 = vmatprep.subr.mxu0 0.0
    %446 = vmatpush1.msra.mxu0 0.0
    %447 = vmatprep.subr.mxu0 0.0
    %448 = vmatpush1.msra.mxu0 0.0
    %449 = vmatprep.subr.mxu0 0.0
    %450 = vmatpush1.msra.mxu0 0.0
    %451 = vmatprep.mubr.f32.mxu0 0.0
    %452 = vmatmul.mubr.f32.gmra.mrb[0].mxu0 %v385
    %v453 = vpop.f32.mrb[0].mxu0
    %v454 = vadd.f32 0.0, %v453
    %v455 = vpop.f32.mrb[0].mxu0
    %456 = vdwg.mxu0
    %v458 = vrot.slane %v454, 4
    %v460 = vadd.f32 %v166, %v458
    %v461 = vadd.f32 %v460, %v67
    %v462 = vxor.u32 %v461, 2147483648
    %v463 = vmul.f32 %v462, 1.442695
    %v464 = vpow.pop %v463
    %v465 = vadd.f32 %v464, 1.0
    %v466 = vrcp.pop %v465
    %v467 = vmul.f32 1.0, %v466
    %v468 = vtanh.pop %v461
    %v470 = vrot.slane %v374, 6
    %v472 = vmul.f32 %v467, %v470
    %474 = vrot.lane.b32.xlu0 %v468, 64
    %v475 = vpop.permute.xlu0 %474
    %v477 = vmul.f32 %v467, %v475
    %479 = vrot.lane.b32.xlu0 %v477, 32
    %v480 = vpop.permute.xlu0 %479
    %v482 = vadd.f32 %v472, %v480
    %v483 = vtanh.pop %v482
    %485 = vrot.lane.b32.xlu0 %v483, 64
    %v486 = vpop.permute.xlu0 %485
    %v488 = vmul.f32 %v467, %v486
    %v490 = vrot.slane %v488, 4
    %491 = vrot.lane.b32.xlu0 %v490, 32
    %v492 = vpop.permute.xlu0 %491
    %v493 = vsel %vm174, %v492, 0
    %495 = vmatprep.subr.mxu0 0.0
    %496 = vmatpush1.msra.mxu0 %v49
    %497 = vmatprep.subr.mxu0 0.0
    %498 = vmatpush1.msra.mxu0 %v50
    %499 = vmatprep.subr.mxu0 0.0
    %500 = vmatpush1.msra.mxu0 %v51
    %501 = vmatprep.subr.mxu0 0.0
    %502 = vmatpush1.msra.mxu0 %v52
    %503 = vmatprep.subr.mxu0 0.0
    %504 = vmatpush1.msra.mxu0 0.0
    %505 = vmatprep.subr.mxu0 0.0
    %506 = vmatpush1.msra.mxu0 0.0
    %507 = vmatprep.subr.mxu0 0.0
    %508 = vmatpush1.msra.mxu0 0.0
    %509 = vmatprep.subr.mxu0 0.0
    %510 = vmatpush1.msra.mxu0 0.0
    %511 = vmatprep.subr.mxu0 0.0
    %512 = vmatpush1.msra.mxu0 0.0
    %513 = vmatprep.subr.mxu0 0.0
    %514 = vmatpush1.msra.mxu0 0.0
    %515 = vmatprep.subr.mxu0 0.0
    %516 = vmatpush1.msra.mxu0 0.0
    %517 = vmatprep.subr.mxu0 0.0
    %518 = vmatpush1.msra.mxu0 0.0
    %519 = vmatprep.subr.mxu0 0.0
    %520 = vmatpush1.msra.mxu0 0.0
    %521 = vmatprep.subr.mxu0 0.0
    %522 = vmatpush1.msra.mxu0 0.0
    %523 = vmatprep.subr.mxu0 0.0
    %524 = vmatpush1.msra.mxu0 0.0
    %525 = vmatprep.subr.mxu0 0.0
    %526 = vmatpush1.msra.mxu0 0.0
    %527 = vmatprep.subr.mxu0 0.0
    %528 = vmatpush1.msra.mxu0 0.0
    %529 = vmatprep.subr.mxu0 0.0
    %530 = vmatpush1.msra.mxu0 0.0
    %531 = vmatprep.subr.mxu0 0.0
    %532 = vmatpush1.msra.mxu0 0.0
    %533 = vmatprep.subr.mxu0 0.0
    %534 = vmatpush1.msra.mxu0 0.0
    %535 = vmatprep.subr.mxu0 0.0
    %536 = vmatpush1.msra.mxu0 0.0
    %537 = vmatprep.subr.mxu0 0.0
    %538 = vmatpush1.msra.mxu0 0.0
    %539 = vmatprep.subr.mxu0 0.0
    %540 = vmatpush1.msra.mxu0 0.0
    %541 = vmatprep.subr.mxu0 0.0
    %542 = vmatpush1.msra.mxu0 0.0
    %543 = vmatprep.subr.mxu0 0.0
    %544 = vmatpush1.msra.mxu0 0.0
    %545 = vmatprep.subr.mxu0 0.0
    %546 = vmatpush1.msra.mxu0 0.0
    %547 = vmatprep.subr.mxu0 0.0
    %548 = vmatpush1.msra.mxu0 0.0
    %549 = vmatprep.subr.mxu0 0.0
    %550 = vmatpush1.msra.mxu0 0.0
    %551 = vmatprep.subr.mxu0 0.0
    %552 = vmatpush1.msra.mxu0 0.0
    %553 = vmatprep.subr.mxu0 0.0
    %554 = vmatpush1.msra.mxu0 0.0
    %555 = vmatprep.subr.mxu0 0.0
    %556 = vmatpush1.msra.mxu0 0.0
    %557 = vmatprep.subr.mxu0 0.0
    %558 = vmatpush1.msra.mxu0 0.0
    %559 = vmatprep.mubr.f32.mxu0 0.0
    %560 = vmatmul.mubr.f32.gmra.mrb[0].mxu0 %v493
    %v561 = vpop.f32.mrb[0].mxu0
    %v562 = vadd.f32 0.0, %v561
    %v563 = vpop.f32.mrb[0].mxu0
    %564 = vdwg.mxu0
    %v566 = vrot.slane %v562, 2
    %v568 = vadd.f32 %v166, %v566
    %v569 = vadd.f32 %v568, %v67
    %v570 = vxor.u32 %v569, 2147483648
    %v571 = vmul.f32 %v570, 1.442695
    %v572 = vpow.pop %v571
    %v573 = vadd.f32 %v572, 1.0
    %v574 = vrcp.pop %v573
    %v575 = vmul.f32 1.0, %v574
    %v576 = vtanh.pop %v569
    %v578 = vrot.slane %v482, 6
    %v580 = vmul.f32 %v575, %v578
    %582 = vrot.lane.b32.xlu0 %v576, 64
    %v583 = vpop.permute.xlu0 %582
    %v585 = vmul.f32 %v575, %v583
    %587 = vrot.lane.b32.xlu0 %v585, 32
    %v588 = vpop.permute.xlu0 %587
    %v590 = vadd.f32 %v580, %v588
    %v591 = vtanh.pop %v590
    %593 = vrot.lane.b32.xlu0 %v591, 64
    %v594 = vpop.permute.xlu0 %593
    %v596 = vmul.f32 %v575, %v594
    %v598 = vrot.slane %v596, 6
    %599 = vrot.lane.b32.xlu0 %v598, 32
    %v600 = vpop.permute.xlu0 %599
    %v601 = vsel %vm174, %v600, 0
    %603 = vmatprep.subr.mxu0 0.0
    %604 = vmatpush1.msra.mxu0 %v49
    %605 = vmatprep.subr.mxu0 0.0
    %606 = vmatpush1.msra.mxu0 %v50
    %607 = vmatprep.subr.mxu0 0.0
    %608 = vmatpush1.msra.mxu0 %v51
    %609 = vmatprep.subr.mxu0 0.0
    %610 = vmatpush1.msra.mxu0 %v52
    %611 = vmatprep.subr.mxu0 0.0
    %612 = vmatpush1.msra.mxu0 0.0
    %613 = vmatprep.subr.mxu0 0.0
    %614 = vmatpush1.msra.mxu0 0.0
    %615 = vmatprep.subr.mxu0 0.0
    %616 = vmatpush1.msra.mxu0 0.0
    %617 = vmatprep.subr.mxu0 0.0
    %618 = vmatpush1.msra.mxu0 0.0
    %619 = vmatprep.subr.mxu0 0.0
    %620 = vmatpush1.msra.mxu0 0.0
    %621 = vmatprep.subr.mxu0 0.0
    %622 = vmatpush1.msra.mxu0 0.0
    %623 = vmatprep.subr.mxu0 0.0
    %624 = vmatpush1.msra.mxu0 0.0
    %625 = vmatprep.subr.mxu0 0.0
    %626 = vmatpush1.msra.mxu0 0.0
    %627 = vmatprep.subr.mxu0 0.0
    %628 = vmatpush1.msra.mxu0 0.0
    %629 = vmatprep.subr.mxu0 0.0
    %630 = vmatpush1.msra.mxu0 0.0
    %631 = vmatprep.subr.mxu0 0.0
    %632 = vmatpush1.msra.mxu0 0.0
    %633 = vmatprep.subr.mxu0 0.0
    %634 = vmatpush1.msra.mxu0 0.0
    %635 = vmatprep.subr.mxu0 0.0
    %636 = vmatpush1.msra.mxu0 0.0
    %637 = vmatprep.subr.mxu0 0.0
    %638 = vmatpush1.msra.mxu0 0.0
    %639 = vmatprep.subr.mxu0 0.0
    %640 = vmatpush1.msra.mxu0 0.0
    %641 = vmatprep.subr.mxu0 0.0
    %642 = vmatpush1.msra.mxu0 0.0
    %643 = vmatprep.subr.mxu0 0.0
    %644 = vmatpush1.msra.mxu0 0.0
    %645 = vmatprep.subr.mxu0 0.0
    %646 = vmatpush1.msra.mxu0 0.0
    %647 = vmatprep.subr.mxu0 0.0
    %648 = vmatpush1.msra.mxu0 0.0
    %649 = vmatprep.subr.mxu0 0.0
    %650 = vmatpush1.msra.mxu0 0.0
    %651 = vmatprep.subr.mxu0 0.0
    %652 = vmatpush1.msra.mxu0 0.0
    %653 = vmatprep.subr.mxu0 0.0
    %654 = vmatpush1.msra.mxu0 0.0
    %655 = vmatprep.subr.mxu0 0.0
    %656 = vmatpush1.msra.mxu0 0.0
    %657 = vmatprep.subr.mxu0 0.0
    %658 = vmatpush1.msra.mxu0 0.0
    %659 = vmatprep.subr.mxu0 0.0
    %660 = vmatpush1.msra.mxu0 0.0
    %661 = vmatprep.subr.mxu0 0.0
    %662 = vmatpush1.msra.mxu0 0.0
    %663 = vmatprep.subr.mxu0 0.0
    %664 = vmatpush1.msra.mxu0 0.0
    %665 = vmatprep.subr.mxu0 0.0
    %666 = vmatpush1.msra.mxu0 0.0
    %667 = vmatprep.mubr.f32.mxu0 0.0
    %668 = vmatmul.mubr.f32.gmra.mrb[0].mxu0 %v601
    %v669 = vpop.f32.mrb[0].mxu0
    %v670 = vadd.f32 0.0, %v669
    %v671 = vpop.f32.mrb[0].mxu0
    %672 = vdwg.mxu0
    %v673 = vadd.f32 %v171, %v670
    %v674 = vadd.f32 %v673, %v67
    %v675 = vxor.u32 %v674, 2147483648
    %v676 = vmul.f32 %v675, 1.442695
    %v677 = vpow.pop %v676
    %v678 = vadd.f32 %v677, 1.0
    %v679 = vrcp.pop %v678
    %v680 = vmul.f32 1.0, %v679
    %v681 = vtanh.pop %v674
    %v683 = vrot.slane %v590, 6
    %v685 = vmul.f32 %v680, %v683
    %687 = vrot.lane.b32.xlu0 %v681, 64
    %v688 = vpop.permute.xlu0 %687
    %v690 = vmul.f32 %v680, %v688
    %692 = vrot.lane.b32.xlu0 %v690, 32
    %v693 = vpop.permute.xlu0 %692
    %v695 = vadd.f32 %v685, %v693
    %v696 = vtanh.pop %v695
    %698 = vrot.lane.b32.xlu0 %v696, 64
    %v699 = vpop.permute.xlu0 %698
    %v701 = vmul.f32 %v680, %v699
    %703 = vrot.lane.b32.xlu0 %v701, 32
    %v704 = vpop.permute.xlu0 %703
    %v705 = vsel %vm174, %v704, 0
    %707 = vmatprep.subr.mxu0 0.0
    %708 = vmatpush1.msra.mxu0 %v49
    %709 = vmatprep.subr.mxu0 0.0
    %710 = vmatpush1.msra.mxu0 %v50
    %711 = vmatprep.subr.mxu0 0.0
    %712 = vmatpush1.msra.mxu0 %v51
    %713 = vmatprep.subr.mxu0 0.0
    %714 = vmatpush1.msra.mxu0 %v52
    %715 = vmatprep.subr.mxu0 0.0
    %716 = vmatpush1.msra.mxu0 0.0
    %717 = vmatprep.subr.mxu0 0.0
    %718 = vmatpush1.msra.mxu0 0.0
    %719 = vmatprep.subr.mxu0 0.0
    %720 = vmatpush1.msra.mxu0 0.0
    %721 = vmatprep.subr.mxu0 0.0
    %722 = vmatpush1.msra.mxu0 0.0
    %723 = vmatprep.subr.mxu0 0.0
    %724 = vmatpush1.msra.mxu0 0.0
    %725 = vmatprep.subr.mxu0 0.0
    %726 = vmatpush1.msra.mxu0 0.0
    %727 = vmatprep.subr.mxu0 0.0
    %728 = vmatpush1.msra.mxu0 0.0
    %729 = vmatprep.subr.mxu0 0.0
    %730 = vmatpush1.msra.mxu0 0.0
    %731 = vmatprep.subr.mxu0 0.0
    %732 = vmatpush1.msra.mxu0 0.0
    %733 = vmatprep.subr.mxu0 0.0
    %734 = vmatpush1.msra.mxu0 0.0
    %735 = vmatprep.subr.mxu0 0.0
    %736 = vmatpush1.msra.mxu0 0.0
    %737 = vmatprep.subr.mxu0 0.0
    %738 = vmatpush1.msra.mxu0 0.0
    %739 = vmatprep.subr.mxu0 0.0
    %740 = vmatpush1.msra.mxu0 0.0
    %741 = vmatprep.subr.mxu0 0.0
    %742 = vmatpush1.msra.mxu0 0.0
    %743 = vmatprep.subr.mxu0 0.0
    %744 = vmatpush1.msra.mxu0 0.0
    %745 = vmatprep.subr.mxu0 0.0
    %746 = vmatpush1.msra.mxu0 0.0
    %747 = vmatprep.subr.mxu0 0.0
    %748 = vmatpush1.msra.mxu0 0.0
    %749 = vmatprep.subr.mxu0 0.0
    %750 = vmatpush1.msra.mxu0 0.0
    %751 = vmatprep.subr.mxu0 0.0
    %752 = vmatpush1.msra.mxu0 0.0
    %753 = vmatprep.subr.mxu0 0.0
    %754 = vmatpush1.msra.mxu0 0.0
    %755 = vmatprep.subr.mxu0 0.0
    %756 = vmatpush1.msra.mxu0 0.0
    %757 = vmatprep.subr.mxu0 0.0
    %758 = vmatpush1.msra.mxu0 0.0
    %759 = vmatprep.subr.mxu0 0.0
    %760 = vmatpush1.msra.mxu0 0.0
    %761 = vmatprep.subr.mxu0 0.0
    %762 = vmatpush1.msra.mxu0 0.0
    %763 = vmatprep.subr.mxu0 0.0
    %764 = vmatpush1.msra.mxu0 0.0
    %765 = vmatprep.subr.mxu0 0.0
    %766 = vmatpush1.msra.mxu0 0.0
    %767 = vmatprep.subr.mxu0 0.0
    %768 = vmatpush1.msra.mxu0 0.0
    %769 = vmatprep.subr.mxu0 0.0
    %770 = vmatpush1.msra.mxu0 0.0
    %771 = vmatprep.mubr.f32.mxu0 0.0
    %772 = vmatmul.mubr.f32.gmra.mrb[0].mxu0 %v705
    %v773 = vpop.f32.mrb[0].mxu0
    %v774 = vadd.f32 0.0, %v773
    %v775 = vpop.f32.mrb[0].mxu0
    %776 = vdwg.mxu0
    %v778 = vrot.slane %v774, 6
    %v780 = vadd.f32 %v171, %v778
    %v781 = vadd.f32 %v780, %v67
    %v782 = vxor.u32 %v781, 2147483648
    %v783 = vmul.f32 %v782, 1.442695
    %v784 = vpow.pop %v783
    %v785 = vadd.f32 %v784, 1.0
    %v786 = vrcp.pop %v785
    %v787 = vmul.f32 1.0, %v786
    %v788 = vtanh.pop %v781
    %v790 = vrot.slane %v695, 6
    %v792 = vmul.f32 %v787, %v790
    %794 = vrot.lane.b32.xlu0 %v788, 64
    %v795 = vpop.permute.xlu0 %794
    %v797 = vmul.f32 %v787, %v795
    %799 = vrot.lane.b32.xlu0 %v797, 32
    %v800 = vpop.permute.xlu0 %799
    %v802 = vadd.f32 %v792, %v800
    %v803 = vtanh.pop %v802
    %805 = vrot.lane.b32.xlu0 %v803, 64
    %v806 = vpop.permute.xlu0 %805
    %v808 = vmul.f32 %v787, %v806
    %v810 = vrot.slane %v808, 2
    %811 = vrot.lane.b32.xlu0 %v810, 32
    %v812 = vpop.permute.xlu0 %811
    %v813 = vsel %vm174, %v812, 0
    %815 = vmatprep.subr.mxu0 0.0
    %816 = vmatpush1.msra.mxu0 %v49
    %817 = vmatprep.subr.mxu0 0.0
    %818 = vmatpush1.msra.mxu0 %v50
    %819 = vmatprep.subr.mxu0 0.0
    %820 = vmatpush1.msra.mxu0 %v51
    %821 = vmatprep.subr.mxu0 0.0
    %822 = vmatpush1.msra.mxu0 %v52
    %823 = vmatprep.subr.mxu0 0.0
    %824 = vmatpush1.msra.mxu0 0.0
    %825 = vmatprep.subr.mxu0 0.0
    %826 = vmatpush1.msra.mxu0 0.0
    %827 = vmatprep.subr.mxu0 0.0
    %828 = vmatpush1.msra.mxu0 0.0
    %829 = vmatprep.subr.mxu0 0.0
    %830 = vmatpush1.msra.mxu0 0.0
    %831 = vmatprep.subr.mxu0 0.0
    %832 = vmatpush1.msra.mxu0 0.0
    %833 = vmatprep.subr.mxu0 0.0
    %834 = vmatpush1.msra.mxu0 0.0
    %835 = vmatprep.subr.mxu0 0.0
    %836 = vmatpush1.msra.mxu0 0.0
    %837 = vmatprep.subr.mxu0 0.0
    %838 = vmatpush1.msra.mxu0 0.0
    %839 = vmatprep.subr.mxu0 0.0
    %840 = vmatpush1.msra.mxu0 0.0
    %841 = vmatprep.subr.mxu0 0.0
    %842 = vmatpush1.msra.mxu0 0.0
    %843 = vmatprep.subr.mxu0 0.0
    %844 = vmatpush1.msra.mxu0 0.0
    %845 = vmatprep.subr.mxu0 0.0
    %846 = vmatpush1.msra.mxu0 0.0
    %847 = vmatprep.subr.mxu0 0.0
    %848 = vmatpush1.msra.mxu0 0.0
    %849 = vmatprep.subr.mxu0 0.0
    %850 = vmatpush1.msra.mxu0 0.0
    %851 = vmatprep.subr.mxu0 0.0
    %852 = vmatpush1.msra.mxu0 0.0
    %853 = vmatprep.subr.mxu0 0.0
    %854 = vmatpush1.msra.mxu0 0.0
    %855 = vmatprep.subr.mxu0 0.0
    %856 = vmatpush1.msra.mxu0 0.0
    %857 = vmatprep.subr.mxu0 0.0
    %858 = vmatpush1.msra.mxu0 0.0
    %859 = vmatprep.subr.mxu0 0.0
    %860 = vmatpush1.msra.mxu0 0.0
    %861 = vmatprep.subr.mxu0 0.0
    %862 = vmatpush1.msra.mxu0 0.0
    %863 = vmatprep.subr.mxu0 0.0
    %864 = vmatpush1.msra.mxu0 0.0
    %865 = vmatprep.subr.mxu0 0.0
    %866 = vmatpush1.msra.mxu0 0.0
    %867 = vmatprep.subr.mxu0 0.0
    %868 = vmatpush1.msra.mxu0 0.0
    %869 = vmatprep.subr.mxu0 0.0
    %870 = vmatpush1.msra.mxu0 0.0
    %871 = vmatprep.subr.mxu0 0.0
    %872 = vmatpush1.msra.mxu0 0.0
    %873 = vmatprep.subr.mxu0 0.0
    %874 = vmatpush1.msra.mxu0 0.0
    %875 = vmatprep.subr.mxu0 0.0
    %876 = vmatpush1.msra.mxu0 0.0
    %877 = vmatprep.subr.mxu0 0.0
    %878 = vmatpush1.msra.mxu0 0.0
    %879 = vmatprep.mubr.f32.mxu0 0.0
    %880 = vmatmul.mubr.f32.gmra.mrb[0].mxu0 %v813
    %v881 = vpop.f32.mrb[0].mxu0
    %v882 = vadd.f32 0.0, %v881
    %v883 = vpop.f32.mrb[0].mxu0
    %884 = vdwg.mxu0
    %v886 = vrot.slane %v882, 4
    %v888 = vadd.f32 %v171, %v886
    %v889 = vadd.f32 %v888, %v67
    %v890 = vxor.u32 %v889, 2147483648
    %v891 = vmul.f32 %v890, 1.442695
    %v892 = vpow.pop %v891
    %v893 = vadd.f32 %v892, 1.0
    %v894 = vrcp.pop %v893
    %v895 = vmul.f32 1.0, %v894
    %v896 = vtanh.pop %v889
    %v898 = vrot.slane %v802, 6
    %v900 = vmul.f32 %v895, %v898
    %902 = vrot.lane.b32.xlu0 %v896, 64
    %v903 = vpop.permute.xlu0 %902
    %v905 = vmul.f32 %v895, %v903
    %907 = vrot.lane.b32.xlu0 %v905, 32
    %v908 = vpop.permute.xlu0 %907
    %v910 = vadd.f32 %v900, %v908
    %v911 = vtanh.pop %v910
    %913 = vrot.lane.b32.xlu0 %v911, 64
    %v914 = vpop.permute.xlu0 %913
    %v916 = vmul.f32 %v895, %v914
    %v918 = vrot.slane %v916, 4
    %919 = vrot.lane.b32.xlu0 %v918, 32
    %v920 = vpop.permute.xlu0 %919
    %v921 = vsel %vm174, %v920, 0
    %923 = vmatprep.subr.mxu0 0.0
    %924 = vmatpush1.msra.mxu0 %v49
    %925 = vmatprep.subr.mxu0 0.0
    %926 = vmatpush1.msra.mxu0 %v50
    %927 = vmatprep.subr.mxu0 0.0
    %928 = vmatpush1.msra.mxu0 %v51
    %929 = vmatprep.subr.mxu0 0.0
    %930 = vmatpush1.msra.mxu0 %v52
    %931 = vmatprep.subr.mxu0 0.0
    %932 = vmatpush1.msra.mxu0 0.0
    %933 = vmatprep.subr.mxu0 0.0
    %934 = vmatpush1.msra.mxu0 0.0
    %935 = vmatprep.subr.mxu0 0.0
    %936 = vmatpush1.msra.mxu0 0.0
    %937 = vmatprep.subr.mxu0 0.0
    %938 = vmatpush1.msra.mxu0 0.0
    %939 = vmatprep.subr.mxu0 0.0
    %940 = vmatpush1.msra.mxu0 0.0
    %941 = vmatprep.subr.mxu0 0.0
    %942 = vmatpush1.msra.mxu0 0.0
    %943 = vmatprep.subr.mxu0 0.0
    %944 = vmatpush1.msra.mxu0 0.0
    %945 = vmatprep.subr.mxu0 0.0
    %946 = vmatpush1.msra.mxu0 0.0
    %947 = vmatprep.subr.mxu0 0.0
    %948 = vmatpush1.msra.mxu0 0.0
    %949 = vmatprep.subr.mxu0 0.0
    %950 = vmatpush1.msra.mxu0 0.0
    %951 = vmatprep.subr.mxu0 0.0
    %952 = vmatpush1.msra.mxu0 0.0
    %953 = vmatprep.subr.mxu0 0.0
    %954 = vmatpush1.msra.mxu0 0.0
    %955 = vmatprep.subr.mxu0 0.0
    %956 = vmatpush1.msra.mxu0 0.0
    %957 = vmatprep.subr.mxu0 0.0
    %958 = vmatpush1.msra.mxu0 0.0
    %959 = vmatprep.subr.mxu0 0.0
    %960 = vmatpush1.msra.mxu0 0.0
    %961 = vmatprep.subr.mxu0 0.0
    %962 = vmatpush1.msra.mxu0 0.0
    %963 = vmatprep.subr.mxu0 0.0
    %964 = vmatpush1.msra.mxu0 0.0
    %965 = vmatprep.subr.mxu0 0.0
    %966 = vmatpush1.msra.mxu0 0.0
    %967 = vmatprep.subr.mxu0 0.0
    %968 = vmatpush1.msra.mxu0 0.0
    %969 = vmatprep.subr.mxu0 0.0
    %970 = vmatpush1.msra.mxu0 0.0
    %971 = vmatprep.subr.mxu0 0.0
    %972 = vmatpush1.msra.mxu0 0.0
    %973 = vmatprep.subr.mxu0 0.0
    %974 = vmatpush1.msra.mxu0 0.0
    %975 = vmatprep.subr.mxu0 0.0
    %976 = vmatpush1.msra.mxu0 0.0
    %977 = vmatprep.subr.mxu0 0.0
    %978 = vmatpush1.msra.mxu0 0.0
    %979 = vmatprep.subr.mxu0 0.0
    %980 = vmatpush1.msra.mxu0 0.0
    %981 = vmatprep.subr.mxu0 0.0
    %982 = vmatpush1.msra.mxu0 0.0
    %983 = vmatprep.subr.mxu0 0.0
    %984 = vmatpush1.msra.mxu0 0.0
    %985 = vmatprep.subr.mxu0 0.0
    %986 = vmatpush1.msra.mxu0 0.0
    %987 = vmatprep.mubr.f32.mxu0 0.0
    %988 = vmatmul.mubr.f32.gmra.mrb[0].mxu0 %v921
    %v989 = vpop.f32.mrb[0].mxu0
    %v990 = vadd.f32 0.0, %v989
    %v991 = vpop.f32.mrb[0].mxu0
    %992 = vdwg.mxu0
    %v994 = vrot.slane %v990, 2
    %v996 = vadd.f32 %v171, %v994
    %v997 = vadd.f32 %v996, %v67
    %v998 = vxor.u32 %v997, 2147483648
    %v999 = vmul.f32 %v998, 1.442695
    %v1000 = vpow.pop %v999
    %v1001 = vadd.f32 %v1000, 1.0
    %v1002 = vrcp.pop %v1001
    %v1003 = vmul.f32 1.0, %v1002
    %v1004 = vtanh.pop %v997
    %v1006 = vrot.slane %v910, 6
    %v1008 = vmul.f32 %v1003, %v1006
    %1010 = vrot.lane.b32.xlu0 %v1004, 64
    %v1011 = vpop.permute.xlu0 %1010
    %v1013 = vmul.f32 %v1003, %v1011
    %1015 = vrot.lane.b32.xlu0 %v1013, 32
    %v1016 = vpop.permute.xlu0 %1015
    %v1018 = vadd.f32 %v1008, %v1016
    %v1019 = vtanh.pop %v1018
    %1021 = vrot.lane.b32.xlu0 %v1019, 64
    %v1022 = vpop.permute.xlu0 %1021
    %v1024 = vmul.f32 %v1003, %v1022
    %1026 = vrot.lane.b32.xlu0 %v1024, 36
    %v1027 = vpop.permute.xlu0 %1026
    %v1029 = vsel %vm88, %v84, %v1027
    %v1031 = vrot.slane %v1029, 6
    %vm1032 = vcmask 293888
    %v1033 = vsel %vm1032, %v1031, 0
    %v1036 = vsel %vm95, %v57, 0
    %1038 = vmatprep.subr.mxu0 0.0
    %1039 = vmatpush1.msra.mxu0 %v53
    %1040 = vmatprep.subr.mxu0 0.0
    %1041 = vmatpush1.msra.mxu0 %v54
    %1042 = vmatprep.subr.mxu0 0.0
    %1043 = vmatpush1.msra.mxu0 %v55
    %1044 = vmatprep.subr.mxu0 0.0
    %1045 = vmatpush1.msra.mxu0 %v56
    %1046 = vmatprep.subr.mxu0 0.0
    %1047 = vmatpush1.msra.mxu0 %v1036
    %1048 = vmatprep.subr.mxu0 0.0
    %1049 = vmatpush1.msra.mxu0 0.0
    %1050 = vmatprep.subr.mxu0 0.0
    %1051 = vmatpush1.msra.mxu0 0.0
    %1052 = vmatprep.subr.mxu0 0.0
    %1053 = vmatpush1.msra.mxu0 0.0
    %1054 = vmatprep.subr.mxu0 0.0
    %1055 = vmatpush1.msra.mxu0 0.0
    %1056 = vmatprep.subr.mxu0 0.0
    %1057 = vmatpush1.msra.mxu0 0.0
    %1058 = vmatprep.subr.mxu0 0.0
    %1059 = vmatpush1.msra.mxu0 0.0
    %1060 = vmatprep.subr.mxu0 0.0
    %1061 = vmatpush1.msra.mxu0 0.0
    %1062 = vmatprep.subr.mxu0 0.0
    %1063 = vmatpush1.msra.mxu0 0.0
    %1064 = vmatprep.subr.mxu0 0.0
    %1065 = vmatpush1.msra.mxu0 0.0
    %1066 = vmatprep.subr.mxu0 0.0
    %1067 = vmatpush1.msra.mxu0 0.0
    %1068 = vmatprep.subr.mxu0 0.0
    %1069 = vmatpush1.msra.mxu0 0.0
    %1070 = vmatprep.subr.mxu0 0.0
    %1071 = vmatpush1.msra.mxu0 0.0
    %1072 = vmatprep.subr.mxu0 0.0
    %1073 = vmatpush1.msra.mxu0 0.0
    %1074 = vmatprep.subr.mxu0 0.0
    %1075 = vmatpush1.msra.mxu0 0.0
    %1076 = vmatprep.subr.mxu0 0.0
    %1077 = vmatpush1.msra.mxu0 0.0
    %1078 = vmatprep.subr.mxu0 0.0
    %1079 = vmatpush1.msra.mxu0 0.0
    %1080 = vmatprep.subr.mxu0 0.0
    %1081 = vmatpush1.msra.mxu0 0.0
    %1082 = vmatprep.subr.mxu0 0.0
    %1083 = vmatpush1.msra.mxu0 0.0
    %1084 = vmatprep.subr.mxu0 0.0
    %1085 = vmatpush1.msra.mxu0 0.0
    %1086 = vmatprep.subr.mxu0 0.0
    %1087 = vmatpush1.msra.mxu0 0.0
    %1088 = vmatprep.subr.mxu0 0.0
    %1089 = vmatpush1.msra.mxu0 0.0
    %1090 = vmatprep.subr.mxu0 0.0
    %1091 = vmatpush1.msra.mxu0 0.0
    %1092 = vmatprep.subr.mxu0 0.0
    %1093 = vmatpush1.msra.mxu0 0.0
    %1094 = vmatprep.subr.mxu0 0.0
    %1095 = vmatpush1.msra.mxu0 0.0
    %1096 = vmatprep.subr.mxu0 0.0
    %1097 = vmatpush1.msra.mxu0 0.0
    %1098 = vmatprep.subr.mxu0 0.0
    %1099 = vmatpush1.msra.mxu0 0.0
    %1100 = vmatprep.subr.mxu0 0.0
    %1101 = vmatpush1.msra.mxu0 0.0
    %1102 = vmatprep.mubr.f32.mxu0 0.0
    %1103 = vmatmul.mubr.f32.gmra.mrb[0].mxu0 %v1033
    %v1104 = vpop.f32.mrb[0].mxu0
    %v1105 = vadd.f32 %v74, %v1104
    %v1106 = vpop.f32.mrb[0].mxu0
    %1107 = vdwg.mxu0
    %v1108 = vxor.u32 %v1105, 2147483648
    %v1109 = vmul.f32 %v1108, 1.442695
    %v1110 = vpow.pop %v1109
    %v1111 = vadd.f32 %v1110, 1.0
    %v1112 = vrcp.pop %v1111
    %v1113 = vmul.f32 1.0, %v1112
    %v1114 = vtanh.pop %v1105
    %v1116 = vrot.slane %v1018, 6
    %v1118 = vmul.f32 %v1113, %v1116
    %1120 = vrot.lane.b32.xlu0 %v1114, 64
    %v1121 = vpop.permute.xlu0 %1120
    %v1123 = vmul.f32 %v1113, %v1121
    %1125 = vrot.lane.b32.xlu0 %v1123, 32
    %v1126 = vpop.permute.xlu0 %1125
    %v1128 = vadd.f32 %v1118, %v1126
    %v1129 = vtanh.pop %v1128
    %1131 = vrot.lane.b32.xlu0 %v1129, 64
    %v1132 = vpop.permute.xlu0 %1131
    %v1134 = vmul.f32 %v1113, %v1132
    %1136 = vrot.lane.b32.xlu0 %v1134, 32
    %v1137 = vpop.permute.xlu0 %1136
    %v1138 = vsel %vm174, %v1137, 0
    %1140 = vmatprep.subr.mxu0 0.0
    %1141 = vmatpush1.msra.mxu0 %v58
    %1142 = vmatprep.subr.mxu0 0.0
    %1143 = vmatpush1.msra.mxu0 %v59
    %1144 = vmatprep.subr.mxu0 0.0
    %1145 = vmatpush1.msra.mxu0 %v60
    %1146 = vmatprep.subr.mxu0 0.0
    %1147 = vmatpush1.msra.mxu0 %v61
    %1148 = vmatprep.subr.mxu0 0.0
    %1149 = vmatpush1.msra.mxu0 0.0
    %1150 = vmatprep.subr.mxu0 0.0
    %1151 = vmatpush1.msra.mxu0 0.0
    %1152 = vmatprep.subr.mxu0 0.0
    %1153 = vmatpush1.msra.mxu0 0.0
    %1154 = vmatprep.subr.mxu0 0.0
    %1155 = vmatpush1.msra.mxu0 0.0
    %1156 = vmatprep.subr.mxu0 0.0
    %1157 = vmatpush1.msra.mxu0 0.0
    %1158 = vmatprep.subr.mxu0 0.0
    %1159 = vmatpush1.msra.mxu0 0.0
    %1160 = vmatprep.subr.mxu0 0.0
    %1161 = vmatpush1.msra.mxu0 0.0
    %1162 = vmatprep.subr.mxu0 0.0
    %1163 = vmatpush1.msra.mxu0 0.0
    %1164 = vmatprep.subr.mxu0 0.0
    %1165 = vmatpush1.msra.mxu0 0.0
    %1166 = vmatprep.subr.mxu0 0.0
    %1167 = vmatpush1.msra.mxu0 0.0
    %1168 = vmatprep.subr.mxu0 0.0
    %1169 = vmatpush1.msra.mxu0 0.0
    %1170 = vmatprep.subr.mxu0 0.0
    %1171 = vmatpush1.msra.mxu0 0.0
    %1172 = vmatprep.subr.mxu0 0.0
    %1173 = vmatpush1.msra.mxu0 0.0
    %1174 = vmatprep.subr.mxu0 0.0
    %1175 = vmatpush1.msra.mxu0 0.0
    %1176 = vmatprep.subr.mxu0 0.0
    %1177 = vmatpush1.msra.mxu0 0.0
    %1178 = vmatprep.subr.mxu0 0.0
    %1179 = vmatpush1.msra.mxu0 0.0
    %1180 = vmatprep.subr.mxu0 0.0
    %1181 = vmatpush1.msra.mxu0 0.0
    %1182 = vmatprep.subr.mxu0 0.0
    %1183 = vmatpush1.msra.mxu0 0.0
    %1184 = vmatprep.subr.mxu0 0.0
    %1185 = vmatpush1.msra.mxu0 0.0
    %1186 = vmatprep.subr.mxu0 0.0
    %1187 = vmatpush1.msra.mxu0 0.0
    %1188 = vmatprep.subr.mxu0 0.0
    %1189 = vmatpush1.msra.mxu0 0.0
    %1190 = vmatprep.subr.mxu0 0.0
    %1191 = vmatpush1.msra.mxu0 0.0
    %1192 = vmatprep.subr.mxu0 0.0
    %1193 = vmatpush1.msra.mxu0 0.0
    %1194 = vmatprep.subr.mxu0 0.0
    %1195 = vmatpush1.msra.mxu0 0.0
    %1196 = vmatprep.subr.mxu0 0.0
    %1197 = vmatpush1.msra.mxu0 0.0
    %1198 = vmatprep.subr.mxu0 0.0
    %1199 = vmatpush1.msra.mxu0 0.0
    %1200 = vmatprep.subr.mxu0 0.0
    %1201 = vmatpush1.msra.mxu0 0.0
    %1202 = vmatprep.subr.mxu0 0.0
    %1203 = vmatpush1.msra.mxu0 0.0
    %1204 = vmatprep.mubr.f32.mxu0 0.0
    %1205 = vmatmul.mubr.f32.gmra.mrb[0].mxu0 %v1138
    %v1206 = vpop.f32.mrb[0].mxu0
    %v1207 = vadd.f32 %v81, %v1206
    %v1208 = vpop.f32.mrb[0].mxu0
    %1209 = vdwg.mxu0
    %s1210 = sld [smem:[#allocation2]]
    %p1211 = scmp.ne.s32.totalorder %s1210, 0
    %s1212 = scalar_select %p1211, 1, 0
    %s1213 = scvt.s32.f32 %s1212
    %v1214 = vstv %s1213
    %v1215 = vmul.f32 %v1214, %v85
    %s1216 = ssub.f32 1.0, %s1213
    %v1217 = vstv %s1216
    %v1218 = vmul.f32 %v1217, %v1207
    %v1219 = vadd.f32 %v1215, %v1218
    %1220 = vrot.lane.b32.xlu0 %v1134, 36
    %v1221 = vpop.permute.xlu0 %1220
    %v1223 = vsel %vm88, %v1219, %v1221
    %v1225 = vsel %vm1032, %v1223, 0
    %1227 = vmatprep.subr.mxu0 0.0
    %1228 = vmatpush1.msra.mxu0 %v53
    %1229 = vmatprep.subr.mxu0 0.0
    %1230 = vmatpush1.msra.mxu0 %v54
    %1231 = vmatprep.subr.mxu0 0.0
    %1232 = vmatpush1.msra.mxu0 %v55
    %1233 = vmatprep.subr.mxu0 0.0
    %1234 = vmatpush1.msra.mxu0 %v56
    %1235 = vmatprep.subr.mxu0 0.0
    %1236 = vmatpush1.msra.mxu0 %v1036
    %1237 = vmatprep.subr.mxu0 0.0
    %1238 = vmatpush1.msra.mxu0 0.0
    %1239 = vmatprep.subr.mxu0 0.0
    %1240 = vmatpush1.msra.mxu0 0.0
    %1241 = vmatprep.subr.mxu0 0.0
    %1242 = vmatpush1.msra.mxu0 0.0
    %1243 = vmatprep.subr.mxu0 0.0
    %1244 = vmatpush1.msra.mxu0 0.0
    %1245 = vmatprep.subr.mxu0 0.0
    %1246 = vmatpush1.msra.mxu0 0.0
    %1247 = vmatprep.subr.mxu0 0.0
    %1248 = vmatpush1.msra.mxu0 0.0
    %1249 = vmatprep.subr.mxu0 0.0
    %1250 = vmatpush1.msra.mxu0 0.0
    %1251 = vmatprep.subr.mxu0 0.0
    %1252 = vmatpush1.msra.mxu0 0.0
    %1253 = vmatprep.subr.mxu0 0.0
    %1254 = vmatpush1.msra.mxu0 0.0
    %1255 = vmatprep.subr.mxu0 0.0
    %1256 = vmatpush1.msra.mxu0 0.0
    %1257 = vmatprep.subr.mxu0 0.0
    %1258 = vmatpush1.msra.mxu0 0.0
    %1259 = vmatprep.subr.mxu0 0.0
    %1260 = vmatpush1.msra.mxu0 0.0
    %1261 = vmatprep.subr.mxu0 0.0
    %1262 = vmatpush1.msra.mxu0 0.0
    %1263 = vmatprep.subr.mxu0 0.0
    %1264 = vmatpush1.msra.mxu0 0.0
    %1265 = vmatprep.subr.mxu0 0.0
    %1266 = vmatpush1.msra.mxu0 0.0
    %1267 = vmatprep.subr.mxu0 0.0
    %1268 = vmatpush1.msra.mxu0 0.0
    %1269 = vmatprep.subr.mxu0 0.0
    %1270 = vmatpush1.msra.mxu0 0.0
    %1271 = vmatprep.subr.mxu0 0.0
    %1272 = vmatpush1.msra.mxu0 0.0
    %1273 = vmatprep.subr.mxu0 0.0
    %1274 = vmatpush1.msra.mxu0 0.0
    %1275 = vmatprep.subr.mxu0 0.0
    %1276 = vmatpush1.msra.mxu0 0.0
    %1277 = vmatprep.subr.mxu0 0.0
    %1278 = vmatpush1.msra.mxu0 0.0
    %1279 = vmatprep.subr.mxu0 0.0
    %1280 = vmatpush1.msra.mxu0 0.0
    %1281 = vmatprep.subr.mxu0 0.0
    %1282 = vmatpush1.msra.mxu0 0.0
    %1283 = vmatprep.subr.mxu0 0.0
    %1284 = vmatpush1.msra.mxu0 0.0
    %1285 = vmatprep.subr.mxu0 0.0
    %1286 = vmatpush1.msra.mxu0 0.0
    %1287 = vmatprep.subr.mxu0 0.0
    %1288 = vmatpush1.msra.mxu0 0.0
    %1289 = vmatprep.subr.mxu0 0.0
    %1290 = vmatpush1.msra.mxu0 0.0
    %1291 = vmatprep.mubr.f32.mxu0 0.0
    %1292 = vmatmul.mubr.f32.gmra.mrb[0].mxu0 %v1225
    %v1293 = vpop.f32.mrb[0].mxu0
    %v1294 = vadd.f32 %v74, %v1293
    %v1295 = vpop.f32.mrb[0].mxu0
    %1296 = vdwg.mxu0
    %v1297 = vxor.u32 %v1294, 2147483648
    %v1298 = vmul.f32 %v1297, 1.442695
    %v1299 = vpow.pop %v1298
    %v1300 = vadd.f32 %v1299, 1.0
    %v1301 = vrcp.pop %v1300
    %v1302 = vmul.f32 1.0, %v1301
    %v1303 = vtanh.pop %v1294
    %v1304 = vmul.f32 %v1302, %v1128
    %1306 = vrot.lane.b32.xlu0 %v1303, 64
    %v1307 = vpop.permute.xlu0 %1306
    %v1309 = vmul.f32 %v1302, %v1307
    %1311 = vrot.lane.b32.xlu0 %v1309, 32
    %v1312 = vpop.permute.xlu0 %1311
    %v1314 = vadd.f32 %v1304, %v1312
    %v1315 = vtanh.pop %v1314
    %1317 = vrot.lane.b32.xlu0 %v1315, 64
    %v1318 = vpop.permute.xlu0 %1317
    %v1320 = vmul.f32 %v1302, %v1318
    %1322 = vrot.lane.b32.xlu0 %v1320, 32
    %v1323 = vpop.permute.xlu0 %1322
    %v1324 = vsel %vm174, %v1323, 0
    %1326 = vmatprep.subr.mxu0 0.0
    %1327 = vmatpush1.msra.mxu0 %v58
    %1328 = vmatprep.subr.mxu0 0.0
    %1329 = vmatpush1.msra.mxu0 %v59
    %1330 = vmatprep.subr.mxu0 0.0
    %1331 = vmatpush1.msra.mxu0 %v60
    %1332 = vmatprep.subr.mxu0 0.0
    %1333 = vmatpush1.msra.mxu0 %v61
    %1334 = vmatprep.subr.mxu0 0.0
    %1335 = vmatpush1.msra.mxu0 0.0
    %1336 = vmatprep.subr.mxu0 0.0
    %1337 = vmatpush1.msra.mxu0 0.0
    %1338 = vmatprep.subr.mxu0 0.0
    %1339 = vmatpush1.msra.mxu0 0.0
    %1340 = vmatprep.subr.mxu0 0.0
    %1341 = vmatpush1.msra.mxu0 0.0
    %1342 = vmatprep.subr.mxu0 0.0
    %1343 = vmatpush1.msra.mxu0 0.0
    %1344 = vmatprep.subr.mxu0 0.0
    %1345 = vmatpush1.msra.mxu0 0.0
    %1346 = vmatprep.subr.mxu0 0.0
    %1347 = vmatpush1.msra.mxu0 0.0
    %1348 = vmatprep.subr.mxu0 0.0
    %1349 = vmatpush1.msra.mxu0 0.0
    %1350 = vmatprep.subr.mxu0 0.0
    %1351 = vmatpush1.msra.mxu0 0.0
    %1352 = vmatprep.subr.mxu0 0.0
    %1353 = vmatpush1.msra.mxu0 0.0
    %1354 = vmatprep.subr.mxu0 0.0
    %1355 = vmatpush1.msra.mxu0 0.0
    %1356 = vmatprep.subr.mxu0 0.0
    %1357 = vmatpush1.msra.mxu0 0.0
    %1358 = vmatprep.subr.mxu0 0.0
    %1359 = vmatpush1.msra.mxu0 0.0
    %1360 = vmatprep.subr.mxu0 0.0
    %1361 = vmatpush1.msra.mxu0 0.0
    %1362 = vmatprep.subr.mxu0 0.0
    %1363 = vmatpush1.msra.mxu0 0.0
    %1364 = vmatprep.subr.mxu0 0.0
    %1365 = vmatpush1.msra.mxu0 0.0
    %1366 = vmatprep.subr.mxu0 0.0
    %1367 = vmatpush1.msra.mxu0 0.0
    %1368 = vmatprep.subr.mxu0 0.0
    %1369 = vmatpush1.msra.mxu0 0.0
    %1370 = vmatprep.subr.mxu0 0.0
    %1371 = vmatpush1.msra.mxu0 0.0
    %1372 = vmatprep.subr.mxu0 0.0
    %1373 = vmatpush1.msra.mxu0 0.0
    %1374 = vmatprep.subr.mxu0 0.0
    %1375 = vmatpush1.msra.mxu0 0.0
    %1376 = vmatprep.subr.mxu0 0.0
    %1377 = vmatpush1.msra.mxu0 0.0
    %1378 = vmatprep.subr.mxu0 0.0
    %1379 = vmatpush1.msra.mxu0 0.0
    %1380 = vmatprep.subr.mxu0 0.0
    %1381 = vmatpush1.msra.mxu0 0.0
    %1382 = vmatprep.subr.mxu0 0.0
    %1383 = vmatpush1.msra.mxu0 0.0
    %1384 = vmatprep.subr.mxu0 0.0
    %1385 = vmatpush1.msra.mxu0 0.0
    %1386 = vmatprep.subr.mxu0 0.0
    %1387 = vmatpush1.msra.mxu0 0.0
    %1388 = vmatprep.subr.mxu0 0.0
    %1389 = vmatpush1.msra.mxu0 0.0
    %1390 = vmatprep.mubr.f32.mxu0 0.0
    %1391 = vmatmul.mubr.f32.gmra.mrb[0].mxu0 %v1324
    %v1392 = vpop.f32.mrb[0].mxu0
    %v1393 = vadd.f32 %v81, %v1392
    %v1394 = vpop.f32.mrb[0].mxu0
    %1395 = vdwg.mxu0
    %s1396 = sld [smem:[#allocation2 + $0x1]]
    %p1397 = scmp.ne.s32.totalorder %s1396, 0
    %s1398 = scalar_select %p1397, 1, 0
    %s1399 = scvt.s32.f32 %s1398
    %v1400 = vstv %s1399
    %v1401 = vmul.f32 %v1400, %v85
    %s1402 = ssub.f32 1.0, %s1399
    %v1403 = vstv %s1402
    %v1404 = vmul.f32 %v1403, %v1393
    %v1406 = vrot.slane %v1404, 6
    %v1408 = vadd.f32 %v1401, %v1406
    %v1409 = vrot.slane %v1320, 6
    %1410 = vrot.lane.b32.xlu0 %v1409, 36
    %v1411 = vpop.permute.xlu0 %1410
    %v1413 = vsel %vm88, %v1408, %v1411
    %v1415 = vrot.slane %v1413, 2
    %v1416 = vsel %vm1032, %v1415, 0
    %1418 = vmatprep.subr.mxu0 0.0
    %1419 = vmatpush1.msra.mxu0 %v53
    %1420 = vmatprep.subr.mxu0 0.0
    %1421 = vmatpush1.msra.mxu0 %v54
    %1422 = vmatprep.subr.mxu0 0.0
    %1423 = vmatpush1.msra.mxu0 %v55
    %1424 = vmatprep.subr.mxu0 0.0
    %1425 = vmatpush1.msra.mxu0 %v56
    %1426 = vmatprep.subr.mxu0 0.0
    %1427 = vmatpush1.msra.mxu0 %v1036
    %1428 = vmatprep.subr.mxu0 0.0
    %1429 = vmatpush1.msra.mxu0 0.0
    %1430 = vmatprep.subr.mxu0 0.0
    %1431 = vmatpush1.msra.mxu0 0.0
    %1432 = vmatprep.subr.mxu0 0.0
    %1433 = vmatpush1.msra.mxu0 0.0
    %1434 = vmatprep.subr.mxu0 0.0
    %1435 = vmatpush1.msra.mxu0 0.0
    %1436 = vmatprep.subr.mxu0 0.0
    %1437 = vmatpush1.msra.mxu0 0.0
    %1438 = vmatprep.subr.mxu0 0.0
    %1439 = vmatpush1.msra.mxu0 0.0
    %1440 = vmatprep.subr.mxu0 0.0
    %1441 = vmatpush1.msra.mxu0 0.0
    %1442 = vmatprep.subr.mxu0 0.0
    %1443 = vmatpush1.msra.mxu0 0.0
    %1444 = vmatprep.subr.mxu0 0.0
    %1445 = vmatpush1.msra.mxu0 0.0
    %1446 = vmatprep.subr.mxu0 0.0
    %1447 = vmatpush1.msra.mxu0 0.0
    %1448 = vmatprep.subr.mxu0 0.0
    %1449 = vmatpush1.msra.mxu0 0.0
    %1450 = vmatprep.subr.mxu0 0.0
    %1451 = vmatpush1.msra.mxu0 0.0
    %1452 = vmatprep.subr.mxu0 0.0
    %1453 = vmatpush1.msra.mxu0 0.0
    %1454 = vmatprep.subr.mxu0 0.0
    %1455 = vmatpush1.msra.mxu0 0.0
    %1456 = vmatprep.subr.mxu0 0.0
    %1457 = vmatpush1.msra.mxu0 0.0
    %1458 = vmatprep.subr.mxu0 0.0
    %1459 = vmatpush1.msra.mxu0 0.0
    %1460 = vmatprep.subr.mxu0 0.0
    %1461 = vmatpush1.msra.mxu0 0.0
    %1462 = vmatprep.subr.mxu0 0.0
    %1463 = vmatpush1.msra.mxu0 0.0
    %1464 = vmatprep.subr.mxu0 0.0
    %1465 = vmatpush1.msra.mxu0 0.0
    %1466 = vmatprep.subr.mxu0 0.0
    %1467 = vmatpush1.msra.mxu0 0.0
    %1468 = vmatprep.subr.mxu0 0.0
    %1469 = vmatpush1.msra.mxu0 0.0
    %1470 = vmatprep.subr.mxu0 0.0
    %1471 = vmatpush1.msra.mxu0 0.0
    %1472 = vmatprep.subr.mxu0 0.0
    %1473 = vmatpush1.msra.mxu0 0.0
    %1474 = vmatprep.subr.mxu0 0.0
    %1475 = vmatpush1.msra.mxu0 0.0
    %1476 = vmatprep.subr.mxu0 0.0
    %1477 = vmatpush1.msra.mxu0 0.0
    %1478 = vmatprep.subr.mxu0 0.0
    %1479 = vmatpush1.msra.mxu0 0.0
    %1480 = vmatprep.subr.mxu0 0.0
    %1481 = vmatpush1.msra.mxu0 0.0
    %1482 = vmatprep.mubr.f32.mxu0 0.0
    %1483 = vmatmul.mubr.f32.gmra.mrb[0].mxu0 %v1416
    %v1484 = vpop.f32.mrb[0].mxu0
    %v1485 = vadd.f32 %v74, %v1484
    %v1486 = vpop.f32.mrb[0].mxu0
    %1487 = vdwg.mxu0
    %v1488 = vxor.u32 %v1485, 2147483648
    %v1489 = vmul.f32 %v1488, 1.442695
    %v1490 = vpow.pop %v1489
    %v1491 = vadd.f32 %v1490, 1.0
    %v1492 = vrcp.pop %v1491
    %v1493 = vmul.f32 1.0, %v1492
    %v1494 = vtanh.pop %v1485
    %v1495 = vmul.f32 %v1493, %v1314
    %1497 = vrot.lane.b32.xlu0 %v1494, 64
    %v1498 = vpop.permute.xlu0 %1497
    %v1500 = vmul.f32 %v1493, %v1498
    %1502 = vrot.lane.b32.xlu0 %v1500, 32
    %v1503 = vpop.permute.xlu0 %1502
    %v1505 = vadd.f32 %v1495, %v1503
    %v1506 = vtanh.pop %v1505
    %1508 = vrot.lane.b32.xlu0 %v1506, 64
    %v1509 = vpop.permute.xlu0 %1508
    %v1511 = vmul.f32 %v1493, %v1509
    %1513 = vrot.lane.b32.xlu0 %v1511, 32
    %v1514 = vpop.permute.xlu0 %1513
    %v1515 = vsel %vm174, %v1514, 0
    %1517 = vmatprep.subr.mxu0 0.0
    %1518 = vmatpush1.msra.mxu0 %v58
    %1519 = vmatprep.subr.mxu0 0.0
    %1520 = vmatpush1.msra.mxu0 %v59
    %1521 = vmatprep.subr.mxu0 0.0
    %1522 = vmatpush1.msra.mxu0 %v60
    %1523 = vmatprep.subr.mxu0 0.0
    %1524 = vmatpush1.msra.mxu0 %v61
    %1525 = vmatprep.subr.mxu0 0.0
    %1526 = vmatpush1.msra.mxu0 0.0
    %1527 = vmatprep.subr.mxu0 0.0
    %1528 = vmatpush1.msra.mxu0 0.0
    %1529 = vmatprep.subr.mxu0 0.0
    %1530 = vmatpush1.msra.mxu0 0.0
    %1531 = vmatprep.subr.mxu0 0.0
    %1532 = vmatpush1.msra.mxu0 0.0
    %1533 = vmatprep.subr.mxu0 0.0
    %1534 = vmatpush1.msra.mxu0 0.0
    %1535 = vmatprep.subr.mxu0 0.0
    %1536 = vmatpush1.msra.mxu0 0.0
    %1537 = vmatprep.subr.mxu0 0.0
    %1538 = vmatpush1.msra.mxu0 0.0
    %1539 = vmatprep.subr.mxu0 0.0
    %1540 = vmatpush1.msra.mxu0 0.0
    %1541 = vmatprep.subr.mxu0 0.0
    %1542 = vmatpush1.msra.mxu0 0.0
    %1543 = vmatprep.subr.mxu0 0.0
    %1544 = vmatpush1.msra.mxu0 0.0
    %1545 = vmatprep.subr.mxu0 0.0
    %1546 = vmatpush1.msra.mxu0 0.0
    %1547 = vmatprep.subr.mxu0 0.0
    %1548 = vmatpush1.msra.mxu0 0.0
    %1549 = vmatprep.subr.mxu0 0.0
    %1550 = vmatpush1.msra.mxu0 0.0
    %1551 = vmatprep.subr.mxu0 0.0
    %1552 = vmatpush1.msra.mxu0 0.0
    %1553 = vmatprep.subr.mxu0 0.0
    %1554 = vmatpush1.msra.mxu0 0.0
    %1555 = vmatprep.subr.mxu0 0.0
    %1556 = vmatpush1.msra.mxu0 0.0
    %1557 = vmatprep.subr.mxu0 0.0
    %1558 = vmatpush1.msra.mxu0 0.0
    %1559 = vmatprep.subr.mxu0 0.0
    %1560 = vmatpush1.msra.mxu0 0.0
    %1561 = vmatprep.subr.mxu0 0.0
    %1562 = vmatpush1.msra.mxu0 0.0
    %1563 = vmatprep.subr.mxu0 0.0
    %1564 = vmatpush1.msra.mxu0 0.0
    %1565 = vmatprep.subr.mxu0 0.0
    %1566 = vmatpush1.msra.mxu0 0.0
    %1567 = vmatprep.subr.mxu0 0.0
    %1568 = vmatpush1.msra.mxu0 0.0
    %1569 = vmatprep.subr.mxu0 0.0
    %1570 = vmatpush1.msra.mxu0 0.0
    %1571 = vmatprep.subr.mxu0 0.0
    %1572 = vmatpush1.msra.mxu0 0.0
    %1573 = vmatprep.subr.mxu0 0.0
    %1574 = vmatpush1.msra.mxu0 0.0
    %1575 = vmatprep.subr.mxu0 0.0
    %1576 = vmatpush1.msra.mxu0 0.0
    %1577 = vmatprep.subr.mxu0 0.0
    %1578 = vmatpush1.msra.mxu0 0.0
    %1579 = vmatprep.subr.mxu0 0.0
    %1580 = vmatpush1.msra.mxu0 0.0
    %1581 = vmatprep.mubr.f32.mxu0 0.0
    %1582 = vmatmul.mubr.f32.gmra.mrb[0].mxu0 %v1515
    %v1583 = vpop.f32.mrb[0].mxu0
    %v1584 = vadd.f32 %v81, %v1583
    %v1585 = vpop.f32.mrb[0].mxu0
    %1586 = vdwg.mxu0
    %s1587 = sld [smem:[#allocation2 + $0x2]]
    %p1588 = scmp.ne.s32.totalorder %s1587, 0
    %s1589 = scalar_select %p1588, 1, 0
    %s1590 = scvt.s32.f32 %s1589
    %v1591 = vstv %s1590
    %v1592 = vmul.f32 %v1591, %v85
    %s1593 = ssub.f32 1.0, %s1590
    %v1594 = vstv %s1593
    %v1595 = vmul.f32 %v1594, %v1584
    %v1597 = vrot.slane %v1595, 4
    %v1599 = vadd.f32 %v1592, %v1597
    %v1600 = vrot.slane %v1511, 4
    %1601 = vrot.lane.b32.xlu0 %v1600, 36
    %v1602 = vpop.permute.xlu0 %1601
    %v1604 = vsel %vm88, %v1599, %v1602
    %v1606 = vrot.slane %v1604, 4
    %v1607 = vsel %vm1032, %v1606, 0
    %1609 = vmatprep.subr.mxu0 0.0
    %1610 = vmatpush1.msra.mxu0 %v53
    %1611 = vmatprep.subr.mxu0 0.0
    %1612 = vmatpush1.msra.mxu0 %v54
    %1613 = vmatprep.subr.mxu0 0.0
    %1614 = vmatpush1.msra.mxu0 %v55
    %1615 = vmatprep.subr.mxu0 0.0
    %1616 = vmatpush1.msra.mxu0 %v56
    %1617 = vmatprep.subr.mxu0 0.0
    %1618 = vmatpush1.msra.mxu0 %v1036
    %1619 = vmatprep.subr.mxu0 0.0
    %1620 = vmatpush1.msra.mxu0 0.0
    %1621 = vmatprep.subr.mxu0 0.0
    %1622 = vmatpush1.msra.mxu0 0.0
    %1623 = vmatprep.subr.mxu0 0.0
    %1624 = vmatpush1.msra.mxu0 0.0
    %1625 = vmatprep.subr.mxu0 0.0
    %1626 = vmatpush1.msra.mxu0 0.0
    %1627 = vmatprep.subr.mxu0 0.0
    %1628 = vmatpush1.msra.mxu0 0.0
    %1629 = vmatprep.subr.mxu0 0.0
    %1630 = vmatpush1.msra.mxu0 0.0
    %1631 = vmatprep.subr.mxu0 0.0
    %1632 = vmatpush1.msra.mxu0 0.0
    %1633 = vmatprep.subr.mxu0 0.0
    %1634 = vmatpush1.msra.mxu0 0.0
    %1635 = vmatprep.subr.mxu0 0.0
    %1636 = vmatpush1.msra.mxu0 0.0
    %1637 = vmatprep.subr.mxu0 0.0
    %1638 = vmatpush1.msra.mxu0 0.0
    %1639 = vmatprep.subr.mxu0 0.0
    %1640 = vmatpush1.msra.mxu0 0.0
    %1641 = vmatprep.subr.mxu0 0.0
    %1642 = vmatpush1.msra.mxu0 0.0
    %1643 = vmatprep.subr.mxu0 0.0
    %1644 = vmatpush1.msra.mxu0 0.0
    %1645 = vmatprep.subr.mxu0 0.0
    %1646 = vmatpush1.msra.mxu0 0.0
    %1647 = vmatprep.subr.mxu0 0.0
    %1648 = vmatpush1.msra.mxu0 0.0
    %1649 = vmatprep.subr.mxu0 0.0
    %1650 = vmatpush1.msra.mxu0 0.0
    %1651 = vmatprep.subr.mxu0 0.0
    %1652 = vmatpush1.msra.mxu0 0.0
    %1653 = vmatprep.subr.mxu0 0.0
    %1654 = vmatpush1.msra.mxu0 0.0
    %1655 = vmatprep.subr.mxu0 0.0
    %1656 = vmatpush1.msra.mxu0 0.0
    %1657 = vmatprep.subr.mxu0 0.0
    %1658 = vmatpush1.msra.mxu0 0.0
    %1659 = vmatprep.subr.mxu0 0.0
    %1660 = vmatpush1.msra.mxu0 0.0
    %1661 = vmatprep.subr.mxu0 0.0
    %1662 = vmatpush1.msra.mxu0 0.0
    %1663 = vmatprep.subr.mxu0 0.0
    %1664 = vmatpush1.msra.mxu0 0.0
    %1665 = vmatprep.subr.mxu0 0.0
    %1666 = vmatpush1.msra.mxu0 0.0
    %1667 = vmatprep.subr.mxu0 0.0
    %1668 = vmatpush1.msra.mxu0 0.0
    %1669 = vmatprep.subr.mxu0 0.0
    %1670 = vmatpush1.msra.mxu0 0.0
    %1671 = vmatprep.subr.mxu0 0.0
    %1672 = vmatpush1.msra.mxu0 0.0
    %1673 = vmatprep.mubr.f32.mxu0 0.0
    %1674 = vmatmul.mubr.f32.gmra.mrb[0].mxu0 %v1607
    %v1675 = vpop.f32.mrb[0].mxu0
    %v1676 = vadd.f32 %v74, %v1675
    %v1677 = vpop.f32.mrb[0].mxu0
    %1678 = vdwg.mxu0
    %v1679 = vxor.u32 %v1676, 2147483648
    %v1680 = vmul.f32 %v1679, 1.442695
    %v1681 = vpow.pop %v1680
    %v1682 = vadd.f32 %v1681, 1.0
    %v1683 = vrcp.pop %v1682
    %v1684 = vmul.f32 1.0, %v1683
    %v1685 = vtanh.pop %v1676
    %v1686 = vmul.f32 %v1684, %v1505
    %1688 = vrot.lane.b32.xlu0 %v1685, 64
    %v1689 = vpop.permute.xlu0 %1688
    %v1691 = vmul.f32 %v1684, %v1689
    %1693 = vrot.lane.b32.xlu0 %v1691, 32
    %v1694 = vpop.permute.xlu0 %1693
    %v1696 = vadd.f32 %v1686, %v1694
    %v1697 = vtanh.pop %v1696
    %1699 = vrot.lane.b32.xlu0 %v1697, 64
    %v1700 = vpop.permute.xlu0 %1699
    %v1702 = vmul.f32 %v1684, %v1700
    %1704 = vrot.lane.b32.xlu0 %v1702, 32
    %v1705 = vpop.permute.xlu0 %1704
    %v1706 = vsel %vm174, %v1705, 0
    %1708 = vmatprep.subr.mxu0 0.0
    %1709 = vmatpush1.msra.mxu0 %v58
    %1710 = vmatprep.subr.mxu0 0.0
    %1711 = vmatpush1.msra.mxu0 %v59
    %1712 = vmatprep.subr.mxu0 0.0
    %1713 = vmatpush1.msra.mxu0 %v60
    %1714 = vmatprep.subr.mxu0 0.0
    %1715 = vmatpush1.msra.mxu0 %v61
    %1716 = vmatprep.subr.mxu0 0.0
    %1717 = vmatpush1.msra.mxu0 0.0
    %1718 = vmatprep.subr.mxu0 0.0
    %1719 = vmatpush1.msra.mxu0 0.0
    %1720 = vmatprep.subr.mxu0 0.0
    %1721 = vmatpush1.msra.mxu0 0.0
    %1722 = vmatprep.subr.mxu0 0.0
    %1723 = vmatpush1.msra.mxu0 0.0
    %1724 = vmatprep.subr.mxu0 0.0
    %1725 = vmatpush1.msra.mxu0 0.0
    %1726 = vmatprep.subr.mxu0 0.0
    %1727 = vmatpush1.msra.mxu0 0.0
    %1728 = vmatprep.subr.mxu0 0.0
    %1729 = vmatpush1.msra.mxu0 0.0
    %1730 = vmatprep.subr.mxu0 0.0
    %1731 = vmatpush1.msra.mxu0 0.0
    %1732 = vmatprep.subr.mxu0 0.0
    %1733 = vmatpush1.msra.mxu0 0.0
    %1734 = vmatprep.subr.mxu0 0.0
    %1735 = vmatpush1.msra.mxu0 0.0
    %1736 = vmatprep.subr.mxu0 0.0
    %1737 = vmatpush1.msra.mxu0 0.0
    %1738 = vmatprep.subr.mxu0 0.0
    %1739 = vmatpush1.msra.mxu0 0.0
    %1740 = vmatprep.subr.mxu0 0.0
    %1741 = vmatpush1.msra.mxu0 0.0
    %1742 = vmatprep.subr.mxu0 0.0
    %1743 = vmatpush1.msra.mxu0 0.0
    %1744 = vmatprep.subr.mxu0 0.0
    %1745 = vmatpush1.msra.mxu0 0.0
    %1746 = vmatprep.subr.mxu0 0.0
    %1747 = vmatpush1.msra.mxu0 0.0
    %1748 = vmatprep.subr.mxu0 0.0
    %1749 = vmatpush1.msra.mxu0 0.0
    %1750 = vmatprep.subr.mxu0 0.0
    %1751 = vmatpush1.msra.mxu0 0.0
    %1752 = vmatprep.subr.mxu0 0.0
    %1753 = vmatpush1.msra.mxu0 0.0
    %1754 = vmatprep.subr.mxu0 0.0
    %1755 = vmatpush1.msra.mxu0 0.0
    %1756 = vmatprep.subr.mxu0 0.0
    %1757 = vmatpush1.msra.mxu0 0.0
    %1758 = vmatprep.subr.mxu0 0.0
    %1759 = vmatpush1.msra.mxu0 0.0
    %1760 = vmatprep.subr.mxu0 0.0
    %1761 = vmatpush1.msra.mxu0 0.0
    %1762 = vmatprep.subr.mxu0 0.0
    %1763 = vmatpush1.msra.mxu0 0.0
    %1764 = vmatprep.subr.mxu0 0.0
    %1765 = vmatpush1.msra.mxu0 0.0
    %1766 = vmatprep.subr.mxu0 0.0
    %1767 = vmatpush1.msra.mxu0 0.0
    %1768 = vmatprep.subr.mxu0 0.0
    %1769 = vmatpush1.msra.mxu0 0.0
    %1770 = vmatprep.subr.mxu0 0.0
    %1771 = vmatpush1.msra.mxu0 0.0
    %1772 = vmatprep.mubr.f32.mxu0 0.0
    %1773 = vmatmul.mubr.f32.gmra.mrb[0].mxu0 %v1706
    %v1774 = vpop.f32.mrb[0].mxu0
    %v1775 = vadd.f32 %v81, %v1774
    %v1776 = vpop.f32.mrb[0].mxu0
    %1777 = vdwg.mxu0
    %s1778 = sld [smem:[#allocation2 + $0x3]]
    %p1779 = scmp.ne.s32.totalorder %s1778, 0
    %s1780 = scalar_select %p1779, 1, 0
    %s1781 = scvt.s32.f32 %s1780
    %v1782 = vstv %s1781
    %v1783 = vmul.f32 %v1782, %v85
    %s1784 = ssub.f32 1.0, %s1781
    %v1785 = vstv %s1784
    %v1786 = vmul.f32 %v1785, %v1775
    %v1788 = vrot.slane %v1786, 2
    %v1790 = vadd.f32 %v1783, %v1788
    %v1791 = vrot.slane %v1702, 2
    %1792 = vrot.lane.b32.xlu0 %v1791, 36
    %v1793 = vpop.permute.xlu0 %1792
    %v1795 = vsel %vm88, %v1790, %v1793
    %v1797 = vrot.slane %v1795, 6
    %v1798 = vsel %vm1032, %v1797, 0
    %1800 = vmatprep.subr.mxu0 0.0
    %1801 = vmatpush1.msra.mxu0 %v53
    %1802 = vmatprep.subr.mxu0 0.0
    %1803 = vmatpush1.msra.mxu0 %v54
    %1804 = vmatprep.subr.mxu0 0.0
    %1805 = vmatpush1.msra.mxu0 %v55
    %1806 = vmatprep.subr.mxu0 0.0
    %1807 = vmatpush1.msra.mxu0 %v56
    %1808 = vmatprep.subr.mxu0 0.0
    %1809 = vmatpush1.msra.mxu0 %v1036
    %1810 = vmatprep.subr.mxu0 0.0
    %1811 = vmatpush1.msra.mxu0 0.0
    %1812 = vmatprep.subr.mxu0 0.0
    %1813 = vmatpush1.msra.mxu0 0.0
    %1814 = vmatprep.subr.mxu0 0.0
    %1815 = vmatpush1.msra.mxu0 0.0
    %1816 = vmatprep.subr.mxu0 0.0
    %1817 = vmatpush1.msra.mxu0 0.0
    %1818 = vmatprep.subr.mxu0 0.0
    %1819 = vmatpush1.msra.mxu0 0.0
    %1820 = vmatprep.subr.mxu0 0.0
    %1821 = vmatpush1.msra.mxu0 0.0
    %1822 = vmatprep.subr.mxu0 0.0
    %1823 = vmatpush1.msra.mxu0 0.0
    %1824 = vmatprep.subr.mxu0 0.0
    %1825 = vmatpush1.msra.mxu0 0.0
    %1826 = vmatprep.subr.mxu0 0.0
    %1827 = vmatpush1.msra.mxu0 0.0
    %1828 = vmatprep.subr.mxu0 0.0
    %1829 = vmatpush1.msra.mxu0 0.0
    %1830 = vmatprep.subr.mxu0 0.0
    %1831 = vmatpush1.msra.mxu0 0.0
    %1832 = vmatprep.subr.mxu0 0.0
    %1833 = vmatpush1.msra.mxu0 0.0
    %1834 = vmatprep.subr.mxu0 0.0
    %1835 = vmatpush1.msra.mxu0 0.0
    %1836 = vmatprep.subr.mxu0 0.0
    %1837 = vmatpush1.msra.mxu0 0.0
    %1838 = vmatprep.subr.mxu0 0.0
    %1839 = vmatpush1.msra.mxu0 0.0
    %1840 = vmatprep.subr.mxu0 0.0
    %1841 = vmatpush1.msra.mxu0 0.0
    %1842 = vmatprep.subr.mxu0 0.0
    %1843 = vmatpush1.msra.mxu0 0.0
    %1844 = vmatprep.subr.mxu0 0.0
    %1845 = vmatpush1.msra.mxu0 0.0
    %1846 = vmatprep.subr.mxu0 0.0
    %1847 = vmatpush1.msra.mxu0 0.0
    %1848 = vmatprep.subr.mxu0 0.0
    %1849 = vmatpush1.msra.mxu0 0.0
    %1850 = vmatprep.subr.mxu0 0.0
    %1851 = vmatpush1.msra.mxu0 0.0
    %1852 = vmatprep.subr.mxu0 0.0
    %1853 = vmatpush1.msra.mxu0 0.0
    %1854 = vmatprep.subr.mxu0 0.0
    %1855 = vmatpush1.msra.mxu0 0.0
    %1856 = vmatprep.subr.mxu0 0.0
    %1857 = vmatpush1.msra.mxu0 0.0
    %1858 = vmatprep.subr.mxu0 0.0
    %1859 = vmatpush1.msra.mxu0 0.0
    %1860 = vmatprep.subr.mxu0 0.0
    %1861 = vmatpush1.msra.mxu0 0.0
    %1862 = vmatprep.subr.mxu0 0.0
    %1863 = vmatpush1.msra.mxu0 0.0
    %1864 = vmatprep.mubr.f32.mxu0 0.0
    %1865 = vmatmul.mubr.f32.gmra.mrb[0].mxu0 %v1798
    %v1866 = vpop.f32.mrb[0].mxu0
    %v1867 = vadd.f32 %v74, %v1866
    %v1868 = vpop.f32.mrb[0].mxu0
    %1869 = vdwg.mxu0
    %v1870 = vxor.u32 %v1867, 2147483648
    %v1871 = vmul.f32 %v1870, 1.442695
    %v1872 = vpow.pop %v1871
    %v1873 = vadd.f32 %v1872, 1.0
    %v1874 = vrcp.pop %v1873
    %v1875 = vmul.f32 1.0, %v1874
    %v1876 = vtanh.pop %v1867
    %v1877 = vmul.f32 %v1875, %v1696
    %1879 = vrot.lane.b32.xlu0 %v1876, 64
    %v1880 = vpop.permute.xlu0 %1879
    %v1882 = vmul.f32 %v1875, %v1880
    %1884 = vrot.lane.b32.xlu0 %v1882, 32
    %v1885 = vpop.permute.xlu0 %1884
    %v1887 = vadd.f32 %v1877, %v1885
    %v1888 = vtanh.pop %v1887
    %1890 = vrot.lane.b32.xlu0 %v1888, 64
    %v1891 = vpop.permute.xlu0 %1890
    %v1893 = vmul.f32 %v1875, %v1891
    %1895 = vrot.lane.b32.xlu0 %v1893, 32
    %v1896 = vpop.permute.xlu0 %1895
    %v1897 = vsel %vm174, %v1896, 0
    %1899 = vmatprep.subr.mxu0 0.0
    %1900 = vmatpush1.msra.mxu0 %v58
    %1901 = vmatprep.subr.mxu0 0.0
    %1902 = vmatpush1.msra.mxu0 %v59
    %1903 = vmatprep.subr.mxu0 0.0
    %1904 = vmatpush1.msra.mxu0 %v60
    %1905 = vmatprep.subr.mxu0 0.0
    %1906 = vmatpush1.msra.mxu0 %v61
    %1907 = vmatprep.subr.mxu0 0.0
    %1908 = vmatpush1.msra.mxu0 0.0
    %1909 = vmatprep.subr.mxu0 0.0
    %1910 = vmatpush1.msra.mxu0 0.0
    %1911 = vmatprep.subr.mxu0 0.0
    %1912 = vmatpush1.msra.mxu0 0.0
    %1913 = vmatprep.subr.mxu0 0.0
    %1914 = vmatpush1.msra.mxu0 0.0
    %1915 = vmatprep.subr.mxu0 0.0
    %1916 = vmatpush1.msra.mxu0 0.0
    %1917 = vmatprep.subr.mxu0 0.0
    %1918 = vmatpush1.msra.mxu0 0.0
    %1919 = vmatprep.subr.mxu0 0.0
    %1920 = vmatpush1.msra.mxu0 0.0
    %1921 = vmatprep.subr.mxu0 0.0
    %1922 = vmatpush1.msra.mxu0 0.0
    %1923 = vmatprep.subr.mxu0 0.0
    %1924 = vmatpush1.msra.mxu0 0.0
    %1925 = vmatprep.subr.mxu0 0.0
    %1926 = vmatpush1.msra.mxu0 0.0
    %1927 = vmatprep.subr.mxu0 0.0
    %1928 = vmatpush1.msra.mxu0 0.0
    %1929 = vmatprep.subr.mxu0 0.0
    %1930 = vmatpush1.msra.mxu0 0.0
    %1931 = vmatprep.subr.mxu0 0.0
    %1932 = vmatpush1.msra.mxu0 0.0
    %1933 = vmatprep.subr.mxu0 0.0
    %1934 = vmatpush1.msra.mxu0 0.0
    %1935 = vmatprep.subr.mxu0 0.0
    %1936 = vmatpush1.msra.mxu0 0.0
    %1937 = vmatprep.subr.mxu0 0.0
    %1938 = vmatpush1.msra.mxu0 0.0
    %1939 = vmatprep.subr.mxu0 0.0
    %1940 = vmatpush1.msra.mxu0 0.0
    %1941 = vmatprep.subr.mxu0 0.0
    %1942 = vmatpush1.msra.mxu0 0.0
    %1943 = vmatprep.subr.mxu0 0.0
    %1944 = vmatpush1.msra.mxu0 0.0
    %1945 = vmatprep.subr.mxu0 0.0
    %1946 = vmatpush1.msra.mxu0 0.0
    %1947 = vmatprep.subr.mxu0 0.0
    %1948 = vmatpush1.msra.mxu0 0.0
    %1949 = vmatprep.subr.mxu0 0.0
    %1950 = vmatpush1.msra.mxu0 0.0
    %1951 = vmatprep.subr.mxu0 0.0
    %1952 = vmatpush1.msra.mxu0 0.0
    %1953 = vmatprep.subr.mxu0 0.0
    %1954 = vmatpush1.msra.mxu0 0.0
    %1955 = vmatprep.subr.mxu0 0.0
    %1956 = vmatpush1.msra.mxu0 0.0
    %1957 = vmatprep.subr.mxu0 0.0
    %1958 = vmatpush1.msra.mxu0 0.0
    %1959 = vmatprep.subr.mxu0 0.0
    %1960 = vmatpush1.msra.mxu0 0.0
    %1961 = vmatprep.subr.mxu0 0.0
    %1962 = vmatpush1.msra.mxu0 0.0
    %1963 = vmatprep.mubr.f32.mxu0 0.0
    %1964 = vmatmul.mubr.f32.gmra.mrb[0].mxu0 %v1897
    %v1965 = vpop.f32.mrb[0].mxu0
    %v1966 = vadd.f32 %v81, %v1965
    %v1967 = vpop.f32.mrb[0].mxu0
    %1968 = vdwg.mxu0
    %s1969 = sld [smem:[#allocation2 + $0x4]]
    %p1970 = scmp.ne.s32.totalorder %s1969, 0
    %s1971 = scalar_select %p1970, 1, 0
    %s1972 = scvt.s32.f32 %s1971
    %v1973 = vstv %s1972
    %v1974 = vmul.f32 %v1973, %v86
    %s1975 = ssub.f32 1.0, %s1972
    %v1976 = vstv %s1975
    %v1977 = vmul.f32 %v1976, %v1966
    %v1978 = vadd.f32 %v1974, %v1977
    %1979 = vrot.lane.b32.xlu0 %v1893, 36
    %v1980 = vpop.permute.xlu0 %1979
    %v1982 = vsel %vm88, %v1978, %v1980
    %v1984 = vsel %vm1032, %v1982, 0
    %1986 = vmatprep.subr.mxu0 0.0
    %1987 = vmatpush1.msra.mxu0 %v53
    %1988 = vmatprep.subr.mxu0 0.0
    %1989 = vmatpush1.msra.mxu0 %v54
    %1990 = vmatprep.subr.mxu0 0.0
    %1991 = vmatpush1.msra.mxu0 %v55
    %1992 = vmatprep.subr.mxu0 0.0
    %1993 = vmatpush1.msra.mxu0 %v56
    %1994 = vmatprep.subr.mxu0 0.0
    %1995 = vmatpush1.msra.mxu0 %v1036
    %1996 = vmatprep.subr.mxu0 0.0
    %1997 = vmatpush1.msra.mxu0 0.0
    %1998 = vmatprep.subr.mxu0 0.0
    %1999 = vmatpush1.msra.mxu0 0.0
    %2000 = vmatprep.subr.mxu0 0.0
    %2001 = vmatpush1.msra.mxu0 0.0
    %2002 = vmatprep.subr.mxu0 0.0
    %2003 = vmatpush1.msra.mxu0 0.0
    %2004 = vmatprep.subr.mxu0 0.0
    %2005 = vmatpush1.msra.mxu0 0.0
    %2006 = vmatprep.subr.mxu0 0.0
    %2007 = vmatpush1.msra.mxu0 0.0
    %2008 = vmatprep.subr.mxu0 0.0
    %2009 = vmatpush1.msra.mxu0 0.0
    %2010 = vmatprep.subr.mxu0 0.0
    %2011 = vmatpush1.msra.mxu0 0.0
    %2012 = vmatprep.subr.mxu0 0.0
    %2013 = vmatpush1.msra.mxu0 0.0
    %2014 = vmatprep.subr.mxu0 0.0
    %2015 = vmatpush1.msra.mxu0 0.0
    %2016 = vmatprep.subr.mxu0 0.0
    %2017 = vmatpush1.msra.mxu0 0.0
    %2018 = vmatprep.subr.mxu0 0.0
    %2019 = vmatpush1.msra.mxu0 0.0
    %2020 = vmatprep.subr.mxu0 0.0
    %2021 = vmatpush1.msra.mxu0 0.0
    %2022 = vmatprep.subr.mxu0 0.0
    %2023 = vmatpush1.msra.mxu0 0.0
    %2024 = vmatprep.subr.mxu0 0.0
    %2025 = vmatpush1.msra.mxu0 0.0
    %2026 = vmatprep.subr.mxu0 0.0
    %2027 = vmatpush1.msra.mxu0 0.0
    %2028 = vmatprep.subr.mxu0 0.0
    %2029 = vmatpush1.msra.mxu0 0.0
    %2030 = vmatprep.subr.mxu0 0.0
    %2031 = vmatpush1.msra.mxu0 0.0
    %2032 = vmatprep.subr.mxu0 0.0
    %2033 = vmatpush1.msra.mxu0 0.0
    %2034 = vmatprep.subr.mxu0 0.0
    %2035 = vmatpush1.msra.mxu0 0.0
    %2036 = vmatprep.subr.mxu0 0.0
    %2037 = vmatpush1.msra.mxu0 0.0
    %2038 = vmatprep.subr.mxu0 0.0
    %2039 = vmatpush1.msra.mxu0 0.0
    %2040 = vmatprep.subr.mxu0 0.0
    %2041 = vmatpush1.msra.mxu0 0.0
    %2042 = vmatprep.subr.mxu0 0.0
    %2043 = vmatpush1.msra.mxu0 0.0
    %2044 = vmatprep.subr.mxu0 0.0
    %2045 = vmatpush1.msra.mxu0 0.0
    %2046 = vmatprep.subr.mxu0 0.0
    %2047 = vmatpush1.msra.mxu0 0.0
    %2048 = vmatprep.subr.mxu0 0.0
    %2049 = vmatpush1.msra.mxu0 0.0
    %2050 = vmatprep.mubr.f32.mxu0 0.0
    %2051 = vmatmul.mubr.f32.gmra.mrb[0].mxu0 %v1984
    %v2052 = vpop.f32.mrb[0].mxu0
    %v2053 = vadd.f32 %v74, %v2052
    %v2054 = vpop.f32.mrb[0].mxu0
    %2055 = vdwg.mxu0
    %v2056 = vxor.u32 %v2053, 2147483648
    %v2057 = vmul.f32 %v2056, 1.442695
    %v2058 = vpow.pop %v2057
    %v2059 = vadd.f32 %v2058, 1.0
    %v2060 = vrcp.pop %v2059
    %v2061 = vmul.f32 1.0, %v2060
    %v2062 = vtanh.pop %v2053
    %v2063 = vmul.f32 %v2061, %v1887
    %2065 = vrot.lane.b32.xlu0 %v2062, 64
    %v2066 = vpop.permute.xlu0 %2065
    %v2068 = vmul.f32 %v2061, %v2066
    %2070 = vrot.lane.b32.xlu0 %v2068, 32
    %v2071 = vpop.permute.xlu0 %2070
    %v2073 = vadd.f32 %v2063, %v2071
    %v2074 = vtanh.pop %v2073
    %2076 = vrot.lane.b32.xlu0 %v2074, 64
    %v2077 = vpop.permute.xlu0 %2076
    %v2079 = vmul.f32 %v2061, %v2077
    %2081 = vrot.lane.b32.xlu0 %v2079, 32
    %v2082 = vpop.permute.xlu0 %2081
    %v2083 = vsel %vm174, %v2082, 0
    %2085 = vmatprep.subr.mxu0 0.0
    %2086 = vmatpush1.msra.mxu0 %v58
    %2087 = vmatprep.subr.mxu0 0.0
    %2088 = vmatpush1.msra.mxu0 %v59
    %2089 = vmatprep.subr.mxu0 0.0
    %2090 = vmatpush1.msra.mxu0 %v60
    %2091 = vmatprep.subr.mxu0 0.0
    %2092 = vmatpush1.msra.mxu0 %v61
    %2093 = vmatprep.subr.mxu0 0.0
    %2094 = vmatpush1.msra.mxu0 0.0
    %2095 = vmatprep.subr.mxu0 0.0
    %2096 = vmatpush1.msra.mxu0 0.0
    %2097 = vmatprep.subr.mxu0 0.0
    %2098 = vmatpush1.msra.mxu0 0.0
    %2099 = vmatprep.subr.mxu0 0.0
    %2100 = vmatpush1.msra.mxu0 0.0
    %2101 = vmatprep.subr.mxu0 0.0
    %2102 = vmatpush1.msra.mxu0 0.0
    %2103 = vmatprep.subr.mxu0 0.0
    %2104 = vmatpush1.msra.mxu0 0.0
    %2105 = vmatprep.subr.mxu0 0.0
    %2106 = vmatpush1.msra.mxu0 0.0
    %2107 = vmatprep.subr.mxu0 0.0
    %2108 = vmatpush1.msra.mxu0 0.0
    %2109 = vmatprep.subr.mxu0 0.0
    %2110 = vmatpush1.msra.mxu0 0.0
    %2111 = vmatprep.subr.mxu0 0.0
    %2112 = vmatpush1.msra.mxu0 0.0
    %2113 = vmatprep.subr.mxu0 0.0
    %2114 = vmatpush1.msra.mxu0 0.0
    %2115 = vmatprep.subr.mxu0 0.0
    %2116 = vmatpush1.msra.mxu0 0.0
    %2117 = vmatprep.subr.mxu0 0.0
    %2118 = vmatpush1.msra.mxu0 0.0
    %2119 = vmatprep.subr.mxu0 0.0
    %2120 = vmatpush1.msra.mxu0 0.0
    %2121 = vmatprep.subr.mxu0 0.0
    %2122 = vmatpush1.msra.mxu0 0.0
    %2123 = vmatprep.subr.mxu0 0.0
    %2124 = vmatpush1.msra.mxu0 0.0
    %2125 = vmatprep.subr.mxu0 0.0
    %2126 = vmatpush1.msra.mxu0 0.0
    %2127 = vmatprep.subr.mxu0 0.0
    %2128 = vmatpush1.msra.mxu0 0.0
    %2129 = vmatprep.subr.mxu0 0.0
    %2130 = vmatpush1.msra.mxu0 0.0
    %2131 = vmatprep.subr.mxu0 0.0
    %2132 = vmatpush1.msra.mxu0 0.0
    %2133 = vmatprep.subr.mxu0 0.0
    %2134 = vmatpush1.msra.mxu0 0.0
    %2135 = vmatprep.subr.mxu0 0.0
    %2136 = vmatpush1.msra.mxu0 0.0
    %2137 = vmatprep.subr.mxu0 0.0
    %2138 = vmatpush1.msra.mxu0 0.0
    %2139 = vmatprep.subr.mxu0 0.0
    %2140 = vmatpush1.msra.mxu0 0.0
    %2141 = vmatprep.subr.mxu0 0.0
    %2142 = vmatpush1.msra.mxu0 0.0
    %2143 = vmatprep.subr.mxu0 0.0
    %2144 = vmatpush1.msra.mxu0 0.0
    %2145 = vmatprep.subr.mxu0 0.0
    %2146 = vmatpush1.msra.mxu0 0.0
    %2147 = vmatprep.subr.mxu0 0.0
    %2148 = vmatpush1.msra.mxu0 0.0
    %2149 = vmatprep.mubr.f32.mxu0 0.0
    %2150 = vmatmul.mubr.f32.gmra.mrb[0].mxu0 %v2083
    %v2151 = vpop.f32.mrb[0].mxu0
    %v2152 = vadd.f32 %v81, %v2151
    %v2153 = vpop.f32.mrb[0].mxu0
    %2154 = vdwg.mxu0
    %s2155 = sld [smem:[#allocation2 + $0x5]]
    %p2156 = scmp.ne.s32.totalorder %s2155, 0
    %s2157 = scalar_select %p2156, 1, 0
    %s2158 = scvt.s32.f32 %s2157
    %v2159 = vstv %s2158
    %v2160 = vmul.f32 %v2159, %v86
    %s2161 = ssub.f32 1.0, %s2158
    %v2162 = vstv %s2161
    %v2163 = vmul.f32 %v2162, %v2152
    %v2165 = vrot.slane %v2163, 6
    %v2167 = vadd.f32 %v2160, %v2165
    %v2168 = vrot.slane %v2079, 6
    %2169 = vrot.lane.b32.xlu0 %v2168, 36
    %v2170 = vpop.permute.xlu0 %2169
    %v2172 = vsel %vm88, %v2167, %v2170
    %v2174 = vrot.slane %v2172, 2
    %v2175 = vsel %vm1032, %v2174, 0
    %2177 = vmatprep.subr.mxu0 0.0
    %2178 = vmatpush1.msra.mxu0 %v53
    %2179 = vmatprep.subr.mxu0 0.0
    %2180 = vmatpush1.msra.mxu0 %v54
    %2181 = vmatprep.subr.mxu0 0.0
    %2182 = vmatpush1.msra.mxu0 %v55
    %2183 = vmatprep.subr.mxu0 0.0
    %2184 = vmatpush1.msra.mxu0 %v56
    %2185 = vmatprep.subr.mxu0 0.0
    %2186 = vmatpush1.msra.mxu0 %v1036
    %2187 = vmatprep.subr.mxu0 0.0
    %2188 = vmatpush1.msra.mxu0 0.0
    %2189 = vmatprep.subr.mxu0 0.0
    %2190 = vmatpush1.msra.mxu0 0.0
    %2191 = vmatprep.subr.mxu0 0.0
    %2192 = vmatpush1.msra.mxu0 0.0
    %2193 = vmatprep.subr.mxu0 0.0
    %2194 = vmatpush1.msra.mxu0 0.0
    %2195 = vmatprep.subr.mxu0 0.0
    %2196 = vmatpush1.msra.mxu0 0.0
    %2197 = vmatprep.subr.mxu0 0.0
    %2198 = vmatpush1.msra.mxu0 0.0
    %2199 = vmatprep.subr.mxu0 0.0
    %2200 = vmatpush1.msra.mxu0 0.0
    %2201 = vmatprep.subr.mxu0 0.0
    %2202 = vmatpush1.msra.mxu0 0.0
    %2203 = vmatprep.subr.mxu0 0.0
    %2204 = vmatpush1.msra.mxu0 0.0
    %2205 = vmatprep.subr.mxu0 0.0
    %2206 = vmatpush1.msra.mxu0 0.0
    %2207 = vmatprep.subr.mxu0 0.0
    %2208 = vmatpush1.msra.mxu0 0.0
    %2209 = vmatprep.subr.mxu0 0.0
    %2210 = vmatpush1.msra.mxu0 0.0
    %2211 = vmatprep.subr.mxu0 0.0
    %2212 = vmatpush1.msra.mxu0 0.0
    %2213 = vmatprep.subr.mxu0 0.0
    %2214 = vmatpush1.msra.mxu0 0.0
    %2215 = vmatprep.subr.mxu0 0.0
    %2216 = vmatpush1.msra.mxu0 0.0
    %2217 = vmatprep.subr.mxu0 0.0
    %2218 = vmatpush1.msra.mxu0 0.0
    %2219 = vmatprep.subr.mxu0 0.0
    %2220 = vmatpush1.msra.mxu0 0.0
    %2221 = vmatprep.subr.mxu0 0.0
    %2222 = vmatpush1.msra.mxu0 0.0
    %2223 = vmatprep.subr.mxu0 0.0
    %2224 = vmatpush1.msra.mxu0 0.0
    %2225 = vmatprep.subr.mxu0 0.0
    %2226 = vmatpush1.msra.mxu0 0.0
    %2227 = vmatprep.subr.mxu0 0.0
    %2228 = vmatpush1.msra.mxu0 0.0
    %2229 = vmatprep.subr.mxu0 0.0
    %2230 = vmatpush1.msra.mxu0 0.0
    %2231 = vmatprep.subr.mxu0 0.0
    %2232 = vmatpush1.msra.mxu0 0.0
    %2233 = vmatprep.subr.mxu0 0.0
    %2234 = vmatpush1.msra.mxu0 0.0
    %2235 = vmatprep.subr.mxu0 0.0
    %2236 = vmatpush1.msra.mxu0 0.0
    %2237 = vmatprep.subr.mxu0 0.0
    %2238 = vmatpush1.msra.mxu0 0.0
    %2239 = vmatprep.subr.mxu0 0.0
    %2240 = vmatpush1.msra.mxu0 0.0
    %2241 = vmatprep.mubr.f32.mxu0 0.0
    %2242 = vmatmul.mubr.f32.gmra.mrb[0].mxu0 %v2175
    %v2243 = vpop.f32.mrb[0].mxu0
    %v2244 = vadd.f32 %v74, %v2243
    %v2245 = vpop.f32.mrb[0].mxu0
    %2246 = vdwg.mxu0
    %v2247 = vxor.u32 %v2244, 2147483648
    %v2248 = vmul.f32 %v2247, 1.442695
    %v2249 = vpow.pop %v2248
    %v2250 = vadd.f32 %v2249, 1.0
    %v2251 = vrcp.pop %v2250
    %v2252 = vmul.f32 1.0, %v2251
    %v2253 = vtanh.pop %v2244
    %v2254 = vmul.f32 %v2252, %v2073
    %2256 = vrot.lane.b32.xlu0 %v2253, 64
    %v2257 = vpop.permute.xlu0 %2256
    %v2259 = vmul.f32 %v2252, %v2257
    %2261 = vrot.lane.b32.xlu0 %v2259, 32
    %v2262 = vpop.permute.xlu0 %2261
    %v2264 = vadd.f32 %v2254, %v2262
    %v2265 = vtanh.pop %v2264
    %2267 = vrot.lane.b32.xlu0 %v2265, 64
    %v2268 = vpop.permute.xlu0 %2267
    %v2270 = vmul.f32 %v2252, %v2268
    %2272 = vrot.lane.b32.xlu0 %v2270, 32
    %v2273 = vpop.permute.xlu0 %2272
    %v2274 = vsel %vm174, %v2273, 0
    %2276 = vmatprep.subr.mxu0 0.0
    %2277 = vmatpush1.msra.mxu0 %v58
    %2278 = vmatprep.subr.mxu0 0.0
    %2279 = vmatpush1.msra.mxu0 %v59
    %2280 = vmatprep.subr.mxu0 0.0
    %2281 = vmatpush1.msra.mxu0 %v60
    %2282 = vmatprep.subr.mxu0 0.0
    %2283 = vmatpush1.msra.mxu0 %v61
    %2284 = vmatprep.subr.mxu0 0.0
    %2285 = vmatpush1.msra.mxu0 0.0
    %2286 = vmatprep.subr.mxu0 0.0
    %2287 = vmatpush1.msra.mxu0 0.0
    %2288 = vmatprep.subr.mxu0 0.0
    %2289 = vmatpush1.msra.mxu0 0.0
    %2290 = vmatprep.subr.mxu0 0.0
    %2291 = vmatpush1.msra.mxu0 0.0
    %2292 = vmatprep.subr.mxu0 0.0
    %2293 = vmatpush1.msra.mxu0 0.0
    %2294 = vmatprep.subr.mxu0 0.0
    %2295 = vmatpush1.msra.mxu0 0.0
    %2296 = vmatprep.subr.mxu0 0.0
    %2297 = vmatpush1.msra.mxu0 0.0
    %2298 = vmatprep.subr.mxu0 0.0
    %2299 = vmatpush1.msra.mxu0 0.0
    %2300 = vmatprep.subr.mxu0 0.0
    %2301 = vmatpush1.msra.mxu0 0.0
    %2302 = vmatprep.subr.mxu0 0.0
    %2303 = vmatpush1.msra.mxu0 0.0
    %2304 = vmatprep.subr.mxu0 0.0
    %2305 = vmatpush1.msra.mxu0 0.0
    %2306 = vmatprep.subr.mxu0 0.0
    %2307 = vmatpush1.msra.mxu0 0.0
    %2308 = vmatprep.subr.mxu0 0.0
    %2309 = vmatpush1.msra.mxu0 0.0
    %2310 = vmatprep.subr.mxu0 0.0
    %2311 = vmatpush1.msra.mxu0 0.0
    %2312 = vmatprep.subr.mxu0 0.0
    %2313 = vmatpush1.msra.mxu0 0.0
    %2314 = vmatprep.subr.mxu0 0.0
    %2315 = vmatpush1.msra.mxu0 0.0
    %2316 = vmatprep.subr.mxu0 0.0
    %2317 = vmatpush1.msra.mxu0 0.0
    %2318 = vmatprep.subr.mxu0 0.0
    %2319 = vmatpush1.msra.mxu0 0.0
    %2320 = vmatprep.subr.mxu0 0.0
    %2321 = vmatpush1.msra.mxu0 0.0
    %2322 = vmatprep.subr.mxu0 0.0
    %2323 = vmatpush1.msra.mxu0 0.0
    %2324 = vmatprep.subr.mxu0 0.0
    %2325 = vmatpush1.msra.mxu0 0.0
    %2326 = vmatprep.subr.mxu0 0.0
    %2327 = vmatpush1.msra.mxu0 0.0
    %2328 = vmatprep.subr.mxu0 0.0
    %2329 = vmatpush1.msra.mxu0 0.0
    %2330 = vmatprep.subr.mxu0 0.0
    %2331 = vmatpush1.msra.mxu0 0.0
    %2332 = vmatprep.subr.mxu0 0.0
    %2333 = vmatpush1.msra.mxu0 0.0
    %2334 = vmatprep.subr.mxu0 0.0
    %2335 = vmatpush1.msra.mxu0 0.0
    %2336 = vmatprep.subr.mxu0 0.0
    %2337 = vmatpush1.msra.mxu0 0.0
    %2338 = vmatprep.subr.mxu0 0.0
    %2339 = vmatpush1.msra.mxu0 0.0
    %2340 = vmatprep.mubr.f32.mxu0 0.0
    %2341 = vmatmul.mubr.f32.gmra.mrb[0].mxu0 %v2274
    %v2342 = vpop.f32.mrb[0].mxu0
    %v2343 = vadd.f32 %v81, %v2342
    %v2344 = vpop.f32.mrb[0].mxu0
    %2345 = vdwg.mxu0
    %s2346 = sld [smem:[#allocation2 + $0x6]]
    %p2347 = scmp.ne.s32.totalorder %s2346, 0
    %s2348 = scalar_select %p2347, 1, 0
    %s2349 = scvt.s32.f32 %s2348
    %v2350 = vstv %s2349
    %v2351 = vmul.f32 %v2350, %v86
    %s2352 = ssub.f32 1.0, %s2349
    %v2353 = vstv %s2352
    %v2354 = vmul.f32 %v2353, %v2343
    %v2356 = vrot.slane %v2354, 4
    %v2358 = vadd.f32 %v2351, %v2356
    %v2359 = vrot.slane %v2270, 4
    %2360 = vrot.lane.b32.xlu0 %v2359, 36
    %v2361 = vpop.permute.xlu0 %2360
    %v2363 = vsel %vm88, %v2358, %v2361
    %v2365 = vrot.slane %v2363, 4
    %v2366 = vsel %vm1032, %v2365, 0
    %2368 = vmatprep.subr.mxu0 0.0
    %2369 = vmatpush1.msra.mxu0 %v53
    %2370 = vmatprep.subr.mxu0 0.0
    %2371 = vmatpush1.msra.mxu0 %v54
    %2372 = vmatprep.subr.mxu0 0.0
    %2373 = vmatpush1.msra.mxu0 %v55
    %2374 = vmatprep.subr.mxu0 0.0
    %2375 = vmatpush1.msra.mxu0 %v56
    %2376 = vmatprep.subr.mxu0 0.0
    %2377 = vmatpush1.msra.mxu0 %v1036
    %2378 = vmatprep.subr.mxu0 0.0
    %2379 = vmatpush1.msra.mxu0 0.0
    %2380 = vmatprep.subr.mxu0 0.0
    %2381 = vmatpush1.msra.mxu0 0.0
    %2382 = vmatprep.subr.mxu0 0.0
    %2383 = vmatpush1.msra.mxu0 0.0
    %2384 = vmatprep.subr.mxu0 0.0
    %2385 = vmatpush1.msra.mxu0 0.0
    %2386 = vmatprep.subr.mxu0 0.0
    %2387 = vmatpush1.msra.mxu0 0.0
    %2388 = vmatprep.subr.mxu0 0.0
    %2389 = vmatpush1.msra.mxu0 0.0
    %2390 = vmatprep.subr.mxu0 0.0
    %2391 = vmatpush1.msra.mxu0 0.0
    %2392 = vmatprep.subr.mxu0 0.0
    %2393 = vmatpush1.msra.mxu0 0.0
    %2394 = vmatprep.subr.mxu0 0.0
    %2395 = vmatpush1.msra.mxu0 0.0
    %2396 = vmatprep.subr.mxu0 0.0
    %2397 = vmatpush1.msra.mxu0 0.0
    %2398 = vmatprep.subr.mxu0 0.0
    %2399 = vmatpush1.msra.mxu0 0.0
    %2400 = vmatprep.subr.mxu0 0.0
    %2401 = vmatpush1.msra.mxu0 0.0
    %2402 = vmatprep.subr.mxu0 0.0
    %2403 = vmatpush1.msra.mxu0 0.0
    %2404 = vmatprep.subr.mxu0 0.0
    %2405 = vmatpush1.msra.mxu0 0.0
    %2406 = vmatprep.subr.mxu0 0.0
    %2407 = vmatpush1.msra.mxu0 0.0
    %2408 = vmatprep.subr.mxu0 0.0
    %2409 = vmatpush1.msra.mxu0 0.0
    %2410 = vmatprep.subr.mxu0 0.0
    %2411 = vmatpush1.msra.mxu0 0.0
    %2412 = vmatprep.subr.mxu0 0.0
    %2413 = vmatpush1.msra.mxu0 0.0
    %2414 = vmatprep.subr.mxu0 0.0
    %2415 = vmatpush1.msra.mxu0 0.0
    %2416 = vmatprep.subr.mxu0 0.0
    %2417 = vmatpush1.msra.mxu0 0.0
    %2418 = vmatprep.subr.mxu0 0.0
    %2419 = vmatpush1.msra.mxu0 0.0
    %2420 = vmatprep.subr.mxu0 0.0
    %2421 = vmatpush1.msra.mxu0 0.0
    %2422 = vmatprep.subr.mxu0 0.0
    %2423 = vmatpush1.msra.mxu0 0.0
    %2424 = vmatprep.subr.mxu0 0.0
    %2425 = vmatpush1.msra.mxu0 0.0
    %2426 = vmatprep.subr.mxu0 0.0
    %2427 = vmatpush1.msra.mxu0 0.0
    %2428 = vmatprep.subr.mxu0 0.0
    %2429 = vmatpush1.msra.mxu0 0.0
    %2430 = vmatprep.subr.mxu0 0.0
    %2431 = vmatpush1.msra.mxu0 0.0
    %2432 = vmatprep.mubr.f32.mxu0 0.0
    %2433 = vmatmul.mubr.f32.gmra.mrb[0].mxu0 %v2366
    %v2434 = vpop.f32.mrb[0].mxu0
    %v2435 = vadd.f32 %v74, %v2434
    %v2436 = vpop.f32.mrb[0].mxu0
    %2437 = vdwg.mxu0
    %v2438 = vxor.u32 %v2435, 2147483648
    %v2439 = vmul.f32 %v2438, 1.442695
    %v2440 = vpow.pop %v2439
    %v2441 = vadd.f32 %v2440, 1.0
    %v2442 = vrcp.pop %v2441
    %v2443 = vmul.f32 1.0, %v2442
    %v2444 = vtanh.pop %v2435
    %v2445 = vmul.f32 %v2443, %v2264
    %2447 = vrot.lane.b32.xlu0 %v2444, 64
    %v2448 = vpop.permute.xlu0 %2447
    %v2450 = vmul.f32 %v2443, %v2448
    %2452 = vrot.lane.b32.xlu0 %v2450, 32
    %v2453 = vpop.permute.xlu0 %2452
    %v2455 = vadd.f32 %v2445, %v2453
    %v2456 = vtanh.pop %v2455
    %2458 = vrot.lane.b32.xlu0 %v2456, 64
    %v2459 = vpop.permute.xlu0 %2458
    %v2461 = vmul.f32 %v2443, %v2459
    %2463 = vrot.lane.b32.xlu0 %v2461, 32
    %v2464 = vpop.permute.xlu0 %2463
    %v2465 = vsel %vm174, %v2464, 0
    %2467 = vmatprep.subr.mxu0 0.0
    %2468 = vmatpush1.msra.mxu0 %v58
    %2469 = vmatprep.subr.mxu0 0.0
    %2470 = vmatpush1.msra.mxu0 %v59
    %2471 = vmatprep.subr.mxu0 0.0
    %2472 = vmatpush1.msra.mxu0 %v60
    %2473 = vmatprep.subr.mxu0 0.0
    %2474 = vmatpush1.msra.mxu0 %v61
    %2475 = vmatprep.subr.mxu0 0.0
    %2476 = vmatpush1.msra.mxu0 0.0
    %2477 = vmatprep.subr.mxu0 0.0
    %2478 = vmatpush1.msra.mxu0 0.0
    %2479 = vmatprep.subr.mxu0 0.0
    %2480 = vmatpush1.msra.mxu0 0.0
    %2481 = vmatprep.subr.mxu0 0.0
    %2482 = vmatpush1.msra.mxu0 0.0
    %2483 = vmatprep.subr.mxu0 0.0
    %2484 = vmatpush1.msra.mxu0 0.0
    %2485 = vmatprep.subr.mxu0 0.0
    %2486 = vmatpush1.msra.mxu0 0.0
    %2487 = vmatprep.subr.mxu0 0.0
    %2488 = vmatpush1.msra.mxu0 0.0
    %2489 = vmatprep.subr.mxu0 0.0
    %2490 = vmatpush1.msra.mxu0 0.0
    %2491 = vmatprep.subr.mxu0 0.0
    %2492 = vmatpush1.msra.mxu0 0.0
    %2493 = vmatprep.subr.mxu0 0.0
    %2494 = vmatpush1.msra.mxu0 0.0
    %2495 = vmatprep.subr.mxu0 0.0
    %2496 = vmatpush1.msra.mxu0 0.0
    %2497 = vmatprep.subr.mxu0 0.0
    %2498 = vmatpush1.msra.mxu0 0.0
    %2499 = vmatprep.subr.mxu0 0.0
    %2500 = vmatpush1.msra.mxu0 0.0
    %2501 = vmatprep.subr.mxu0 0.0
    %2502 = vmatpush1.msra.mxu0 0.0
    %2503 = vmatprep.subr.mxu0 0.0
    %2504 = vmatpush1.msra.mxu0 0.0
    %2505 = vmatprep.subr.mxu0 0.0
    %2506 = vmatpush1.msra.mxu0 0.0
    %2507 = vmatprep.subr.mxu0 0.0
    %2508 = vmatpush1.msra.mxu0 0.0
    %2509 = vmatprep.subr.mxu0 0.0
    %2510 = vmatpush1.msra.mxu0 0.0
    %2511 = vmatprep.subr.mxu0 0.0
    %2512 = vmatpush1.msra.mxu0 0.0
    %2513 = vmatprep.subr.mxu0 0.0
    %2514 = vmatpush1.msra.mxu0 0.0
    %2515 = vmatprep.subr.mxu0 0.0
    %2516 = vmatpush1.msra.mxu0 0.0
    %2517 = vmatprep.subr.mxu0 0.0
    %2518 = vmatpush1.msra.mxu0 0.0
    %2519 = vmatprep.subr.mxu0 0.0
    %2520 = vmatpush1.msra.mxu0 0.0
    %2521 = vmatprep.subr.mxu0 0.0
    %2522 = vmatpush1.msra.mxu0 0.0
    %2523 = vmatprep.subr.mxu0 0.0
    %2524 = vmatpush1.msra.mxu0 0.0
    %2525 = vmatprep.subr.mxu0 0.0
    %2526 = vmatpush1.msra.mxu0 0.0
    %2527 = vmatprep.subr.mxu0 0.0
    %2528 = vmatpush1.msra.mxu0 0.0
    %2529 = vmatprep.subr.mxu0 0.0
    %2530 = vmatpush1.msra.mxu0 0.0
    %2531 = vmatprep.mubr.f32.mxu0 0.0
    %2532 = vmatmul.mubr.f32.gmra.mrb[0].mxu0 %v2465
    %v2533 = vpop.f32.mrb[0].mxu0
    %v2534 = vadd.f32 %v81, %v2533
    %v2535 = vpop.f32.mrb[0].mxu0
    %2536 = vdwg.mxu0
    %2538 = vrot.lane.b32.xlu0 %v1393, 4
    %v2539 = vpop.permute.xlu0 %2538
    %2542 = vrot.lane.b32.xlu0 %v1584, 8
    %v2543 = vpop.permute.xlu0 %2542
    %2546 = vrot.lane.b32.xlu0 %v1775, 12
    %v2547 = vpop.permute.xlu0 %2546
    %2550 = vrot.lane.b32.xlu0 %v1966, 16
    %v2551 = vpop.permute.xlu0 %2550
    %2554 = vrot.lane.b32.xlu0 %v2152, 20
    %v2555 = vpop.permute.xlu0 %2554
    %2558 = vrot.lane.b32.xlu0 %v2343, 24
    %v2559 = vpop.permute.xlu0 %2558
    %2562 = vrot.lane.b32.xlu0 %v2534, 28
    %v2563 = vpop.permute.xlu0 %2562
    %v2565 = vsel %vm88, %v1207, %v2539
    %vm2566 = vcmask 64512
    %v2567 = vsel %vm2566, %v2565, %v2543
    %vm2568 = vcmask 97280
    %v2569 = vsel %vm2568, %v2567, %v2547
    %vm2570 = vcmask 130048
    %v2571 = vsel %vm2570, %v2569, %v2551
    %vm2572 = vcmask 162816
    %v2573 = vsel %vm2572, %v2571, %v2555
    %vm2574 = vcmask 195584
    %v2575 = vsel %vm2574, %v2573, %v2559
    %vm2576 = vcmask 228352
    %v2577 = vsel %vm2576, %v2575, %v2563
    %vm2578 = vcmask 254976
    %2579 = vst.msk [vmem:[#allocation5] sm:$0x3] %vm2578, %v2577
    // Predicated region
    $region46: #{tpu_custom_call.1} parent=1 // pred_check
      _
    $region47: #{tpu_custom_call.1} parent=1 // pred_check_branch
      %2581 = sbr.rel (0) target = $region49
    $region48: #{tpu_custom_call.1} parent=1 // pred_region
      %s2583 = ssub.s32 32, 32
      %2584 = vsyncadd [#allocation3], %s2583
      %s2586 = sshll.u32 [#allocation5], 4
      %s2587 = int_to_ptr.vmem [resolvable:$true] %s2586
      %2589 = dma.vmem_to_hbm [thread:$0]  %s2587, 32, %s10, [#allocation3]
    $region49: #{tpu_custom_call.1} parent=1 // pred_fallthru
      _
    // Predicated region
    $region50: #{tpu_custom_call.1} parent=1 // pred_check
      _
    $region51: #{tpu_custom_call.1} parent=1 // pred_check_branch
      %2591 = sbr.rel (0) target = $region53
    $region52: #{tpu_custom_call.1} parent=1 // pred_region
      %2592 = dma.done [#allocation3], 32
    $region53: #{tpu_custom_call.1} parent=1 // pred_fallthru
      _
    %2593 = vsyncpa [#allocation3], 1
    %2594 = vsyncpa [#allocation4], 1

</llo_original>
